<compile_context>
chip_gen: v7x
topology: tpu7x:2x2x1
jax: 0.10.0
libtpu: 0.0.40
codegen_flags: <defaults>
</compile_context>

<pallas_src>
import functools

import jax
import jax.numpy as jnp
import numpy as np
from jax.experimental import pallas as pl
from jax.experimental.pallas import tpu as pltpu


_M_TILE = 512
_PARALLEL = pltpu.CompilerParams(dimension_semantics=("parallel",))


def _round_up(v, m):
    return (v + m - 1) // m * m


def _pad_cols(a, mp):
    m = a.shape[1]
    return a if m == mp else jnp.pad(a, ((0, 0), (0, mp - m)))


# ----------------------------- Pallas kernels ------------------------------

def _bottleneck_conv1_kernel(x0_ref, wb_ref, bb_ref, ab_ref,
                             w1s_ref, b1s_ref, a1s_ref,
                             x1_ref, a0s_ref):
    # x1 = PReLU(Wb @ X0 + bb)                             -> (nr, mt)
    acc = jnp.dot(wb_ref[...], x0_ref[...], preferred_element_type=jnp.float32)
    acc = acc + bb_ref[...]
    x1 = jnp.where(acc >= 0.0, acc, acc * ab_ref[...])
    x1_ref[...] = x1
    # a0 (phase-stacked) = PReLU(W1s @ x1 + b1s)           -> (scale^2*nr, mt)
    acc = jnp.dot(w1s_ref[...], x1.astype(w1s_ref.dtype),
                  preferred_element_type=jnp.float32)
    acc = acc + b1s_ref[...]
    a0s_ref[...] = jnp.where(acc >= 0.0, acc, acc * a1s_ref[...])


def _mm_prelu_res_kernel(slab_ref, w_ref, b_ref, a_ref, res_ref, o_ref, *, sign):
    # out = PReLU(W @ slab + b)  +/-  res   (residual fused into epilogue)
    acc = jnp.dot(w_ref[...], slab_ref[...], preferred_element_type=jnp.float32)
    acc = acc + b_ref[...]
    acc = jnp.where(acc >= 0.0, acc, acc * a_ref[...])
    res = res_ref[...]
    o_ref[...] = acc - res if sign < 0 else acc + res


# ---------------------------- pallas_call wrappers ---------------------------

def _bottleneck_conv1(x0, q):
    """x0: (Cin_pad, M) lane-dense. Returns x1 (nr, M), a0 phase-stacked (4nr, M)."""
    cin, m = x0.shape
    nr = q["wb"].shape[0]
    s2nr = q["w1s"].shape[0]
    mp = _round_up(m, 128)
    mt = min(_M_TILE, mp)
    if mp % mt:
        mp = _round_up(mp, mt)
    x0p = _pad_cols(x0, mp).astype(q["wb"].dtype)
    x1, a0s = pl.pallas_call(
        _bottleneck_conv1_kernel,
        out_shape=(jax.ShapeDtypeStruct((nr, mp), jnp.float32),
                   jax.ShapeDtypeStruct((s2nr, mp), jnp.float32)),
        grid=(mp // mt,),
        in_specs=[
            pl.BlockSpec((cin, mt), lambda i: (0, i)),
            pl.BlockSpec((nr, cin), lambda i: (0, 0)),
            pl.BlockSpec((nr, 1), lambda i: (0, 0)),
            pl.BlockSpec((nr, 1), lambda i: (0, 0)),
            pl.BlockSpec((s2nr, nr), lambda i: (0, 0)),
            pl.BlockSpec((s2nr, 1), lambda i: (0, 0)),
            pl.BlockSpec((s2nr, 1), lambda i: (0, 0)),
        ],
        out_specs=(pl.BlockSpec((nr, mt), lambda i: (0, i)),
                   pl.BlockSpec((s2nr, mt), lambda i: (0, i))),
        compiler_params=_PARALLEL,
    )(x0p, q["wb"], q["bb"], q["ab"], q["w1s"], q["b1s"], q["a1s"])
    if mp != m:
        x1, a0s = x1[:, :m], a0s[:, :m]
    return x1, a0s


def _mm_prelu_res(slab, w, b, alpha, res, *, sign):
    """out = PReLU(w @ slab + b) + sign*res.  slab:(K,M) w:(C,K) res:(C,M)."""
    cout, k = w.shape
    m = slab.shape[1]
    mp = _round_up(m, 128)
    mt = min(_M_TILE, mp)
    if mp % mt:
        mp = _round_up(mp, mt)
    slab_p = _pad_cols(slab, mp).astype(w.dtype)      # bf16 MXU operands
    res_p = _pad_cols(res, mp)
    out = pl.pallas_call(
        functools.partial(_mm_prelu_res_kernel, sign=sign),
        out_shape=jax.ShapeDtypeStruct((cout, mp), jnp.float32),
        grid=(mp // mt,),
        in_specs=[
            pl.BlockSpec((k, mt), lambda i: (0, i)),
            pl.BlockSpec((cout, k), lambda i: (0, 0)),
            pl.BlockSpec((cout, 1), lambda i: (0, 0)),
            pl.BlockSpec((cout, 1), lambda i: (0, 0)),
            pl.BlockSpec((cout, mt), lambda i: (0, i)),
        ],
        out_specs=pl.BlockSpec((cout, mt), lambda i: (0, i)),
        compiler_params=_PARALLEL,
    )(slab_p, w, b, alpha, res_p)
    return out if mp == m else out[:, :m]


# ------------------------------ layout plumbing ------------------------------

def _im2col_cf(x_sp, k, stride, pad):
    """Channels-first im2col: (C, N, H, W) -> (C*k*k, N*Ho*Wo), K is C-major."""
    c, n, h, w = x_sp.shape
    xp = jnp.pad(x_sp, ((0, 0), (0, 0), (pad, pad), (pad, pad)))
    ho = (h + 2 * pad - k) // stride + 1
    wo = (w + 2 * pad - k) // stride + 1
    taps = []
    for ti in range(k):
        for tj in range(k):
            taps.append(xp[:, :, ti:ti + stride * ho:stride,
                           tj:tj + stride * wo:stride])
    taps = jnp.stack(taps, axis=1)                    # (C, k*k, N, Ho, Wo)
    return taps.reshape(c * k * k, n * ho * wo)


# ------------------------------- parameters ----------------------------------

def make_params(key, in_channels=4, nr=8, scale=2):
    """Raw parameters in PyTorch layouts (Conv2d: OIHW, ConvTranspose2d: IOHW)."""
    ks = {2: 6, 4: 8, 8: 12}[scale]
    keys = jax.random.split(key, 12)
    p = {}
    p["wb"] = 0.1 * jax.random.normal(keys[0], (nr, in_channels, 1, 1), jnp.float32)
    p["bb"] = 0.05 * jax.random.normal(keys[1], (nr,), jnp.float32)
    p["ab"] = jax.random.uniform(keys[2], (nr,), jnp.float32, 0.1, 0.4)
    p["w1"] = 0.1 * jax.random.normal(keys[3], (nr, nr // (scale * scale), 1, 1),
                                      jnp.float32)
    p["b1"] = 0.05 * jax.random.normal(keys[4], (nr,), jnp.float32)
    p["a1"] = jax.random.uniform(keys[5], (nr,), jnp.float32, 0.1, 0.4)
    p["w2"] = 0.05 * jax.random.normal(keys[6], (nr, nr, ks, ks), jnp.float32)
    p["b2"] = 0.05 * jax.random.normal(keys[7], (nr,), jnp.float32)
    p["a2"] = jax.random.uniform(keys[8], (nr,), jnp.float32, 0.1, 0.4)
    p["w3"] = 0.05 * jax.random.normal(keys[9], (nr, nr, ks, ks), jnp.float32)
    p["b3"] = 0.05 * jax.random.normal(keys[10], (nr,), jnp.float32)
    p["a3"] = jax.random.uniform(keys[11], (nr,), jnp.float32, 0.1, 0.4)
    return p


def pack_params(p, nr=8, scale=2):
    """Prepack weights once into lane-dense matmul form."""
    # TODO(synk): sub-pixel ConvTranspose packing written for scale=2 (the
    # instantiated config); other scales would need their own tap split.
    assert scale == 2
    s2 = scale * scale
    q = {}
    # bottleneck 1x1: (nr, Cin) with the contraction dim zero-padded to 8.
    cin = p["wb"].shape[1]
    cin_p = _round_up(cin, 8)
    wb = p["wb"].reshape(nr, cin)
    if cin_p != cin:
        wb = jnp.pad(wb, ((0, 0), (0, cin_p - cin)))
    q["wb"] = wb.astype(jnp.float32)
    q["bb"] = p["bb"].reshape(nr, 1)
    q["ab"] = p["ab"].reshape(nr, 1)
    # conv_1 (PixelShuffle + 1x1) folded into a phase-stacked (s2*nr, nr) weight:
    #   a0[n,co,2h+i,2w+j] = PReLU(sum_c W1[co,c] * x1[n, 4c + 2i + j, h, w] + b1)
    w1 = p["w1"].reshape(nr, nr // s2)
    w1s = jnp.zeros((s2 * nr, nr), jnp.float32)
    for ph in range(s2):
        for c in range(nr // s2):
            w1s = w1s.at[ph * nr:(ph + 1) * nr, c * s2 + ph].set(w1[:, c])
    q["w1s"] = w1s
    q["b1s"] = jnp.tile(p["b1"], s2).reshape(s2 * nr, 1)
    q["a1s"] = jnp.tile(p["a1"], s2).reshape(s2 * nr, 1)
    # conv_2 6x6/stride-2: plain OIHW flatten -> (nr, nr*36), bf16 MXU operand.
    q["w2"] = p["w2"].reshape(nr, -1).astype(jnp.bfloat16)
    q["b2"] = p["b2"].reshape(nr, 1)
    q["a2"] = p["a2"].reshape(nr, 1)
    # conv_3 ConvTranspose 6x6/stride-2/pad-2 -> 4 sub-pixel 3x3 convs, stacked:
    #   out[n,co,2y+iy,2x+ix] = sum_{ci,t,u} e_pad[n,ci,y+t-1,x+u-1]
    #                                        * W3[ci,co, iy+4-2t, ix+4-2u]
    rows = []
    for iy in range(scale):
        for ix in range(scale):
            sub = jnp.flip(p["w3"][:, :, iy::scale, ix::scale], axis=(2, 3))
            rows.append(sub.transpose(1, 0, 2, 3).reshape(nr, -1))   # (nr, nr*9)
    q["w3s"] = jnp.concatenate(rows, axis=0).astype(jnp.bfloat16)    # (s2*nr, nr*9)
    q["b3s"] = jnp.tile(p["b3"], s2).reshape(s2 * nr, 1)
    q["a3s"] = jnp.tile(p["a3"], s2).reshape(s2 * nr, 1)
    return q


# --------------------------- DenseProjection forward -------------------------

def dense_projection_forward(x, q, nr=8, scale=2):
    """DenseProjection.forward with use_pa=False, as 3 fused Pallas kernels."""
    # TODO(synk): PixelAttention (use_pa=True branch) is referenced by the PyTorch
    # module but its class is not provided; the module is evaluated with use_pa=False.
    assert scale == 2
    ks = {2: 6}[scale]
    n, cin, h, w = x.shape
    s2 = scale * scale
    m0 = n * h * w

    # channel-major, lane-dense layout: (C, N*H*W)
    x0 = x.transpose(1, 0, 2, 3).reshape(cin, m0)
    cin_p = q["wb"].shape[1]
    if cin_p != cin:
        x0 = jnp.pad(x0, ((0, cin_p - cin), (0, 0)))

    # K1: bottleneck + (PixelShuffle o 1x1 conv) as a phase-stacked matmul.
    x1, a0s = _bottleneck_conv1(x0, q)                      # (nr, m0), (s2*nr, m0)

    # Interleave a0 phases to high-res spatial layout and im2col for conv_2.
    a0_sp = a0s.reshape(scale, scale, nr, n, h, w).transpose(2, 3, 4, 0, 5, 1)
    a0_sp = a0_sp.reshape(nr, n, scale * h, scale * w)
    p2 = _im2col_cf(a0_sp, ks, scale, 2)                    # (nr*ks*ks, m0)

    # K2: conv_2 + PReLU with fused residual  e = b0 - x.
    e = _mm_prelu_res(p2, q["w2"], q["b2"], q["a2"], x1, sign=-1.0)

    # conv_3 via sub-pixel decomposition: 3x3 taps of e (pad 1, stride 1).
    p3 = _im2col_cf(e.reshape(nr, n, h, w), 3, 1, 1)        # (nr*9, m0)

    # K3: conv_3 + PReLU with fused residual  out = a1 + a0 (phase-stacked).
    outs = _mm_prelu_res(p3, q["w3s"], q["b3s"], q["a3s"], a0s, sign=1.0)

    # Interleave phases back to NCHW.
    out = outs.reshape(scale, scale, nr, n, h, w).transpose(3, 2, 4, 0, 5, 1)
    return out.reshape(n, nr, scale * h, scale * w)


# -------------------------- pure-JAX reference check -------------------------

def pixel_shuffle(x, r):
    n, c, h, w = x.shape
    co = c // (r * r)
    x = x.reshape(n, co, r, r, h, w).transpose(0, 1, 4, 2, 5, 3)
    return x.reshape(n, co, h * r, w * r)


def _ref_conv(x, w, b, stride, pad, lhs_dilation=(1, 1)):
    y = jax.lax.conv_general_dilated(
        x, w, window_strides=(stride, stride),
        padding=((pad, pad), (pad, pad)),
        lhs_dilation=lhs_dilation,
        dimension_numbers=("NCHW", "OIHW", "NCHW"),
        precision=jax.lax.Precision.HIGHEST)
    return y + b.reshape(1, -1, 1, 1)


def _ref_prelu(x, alpha):
    return jnp.where(x >= 0, x, x * alpha.reshape(1, -1, 1, 1))


def ref_forward(x, p, scale=2):
    ks = {2: 6, 4: 8, 8: 12}[scale]
    x = _ref_prelu(_ref_conv(x, p["wb"], p["bb"], 1, 0), p["ab"])
    xs = pixel_shuffle(x, scale)
    a0 = _ref_prelu(_ref_conv(xs, p["w1"], p["b1"], 1, 0), p["a1"])
    b0 = _ref_prelu(_ref_conv(a0, p["w2"], p["b2"], scale, 2), p["a2"])
    e = b0 - x
    w3_eq = jnp.flip(p["w3"], (2, 3)).transpose(1, 0, 2, 3)
    a1 = _ref_prelu(
        _ref_conv(e, w3_eq, p["b3"], 1, ks - 1 - 2, lhs_dilation=(scale, scale)),
        p["a3"])
    return a0 + a1


# ---------------------------------- main --------------------------------------

if __name__ == "__main__":
    key = jax.random.PRNGKey(0)
    kx, kp = jax.random.split(key)

    N, in_channels, H, W = 2, 4, 16, 16
    nr, scale = 8, 2
    x = jax.random.normal(kx, (N, in_channels, H, W), jnp.float32)
    raw = make_params(kp, in_channels=in_channels, nr=nr, scale=scale)
    packed = pack_params(raw, nr=nr, scale=scale)

    fwd = jax.jit(functools.partial(dense_projection_forward, nr=nr, scale=scale))
    out = jax.block_until_ready(fwd(x, packed))

    ref = jax.block_until_ready(ref_forward(x, raw, scale=scale))
    assert out.shape == (N, nr, H * scale, W * scale), out.shape
    err = float(np.max(np.abs(np.asarray(out) - np.asarray(ref))))
    assert np.allclose(np.asarray(out), np.asarray(ref), rtol=2e-2, atol=2e-2), err

    print("KERNEL_OK")
</pallas_src>

<mosaic_0001>
module attributes {stable_mosaic.version = 11 : i64} {
  func.func @_bottleneck_conv1_kernel(%arg0: i32, %arg1: memref<8x512xf32, #tpu.memory_space<vmem>>, %arg2: memref<8x8xf32, #tpu.memory_space<vmem>>, %arg3: memref<8x1xf32, #tpu.memory_space<vmem>>, %arg4: memref<8x1xf32, #tpu.memory_space<vmem>>, %arg5: memref<32x8xf32, #tpu.memory_space<vmem>>, %arg6: memref<32x1xf32, #tpu.memory_space<vmem>>, %arg7: memref<32x1xf32, #tpu.memory_space<vmem>>, %arg8: memref<8x512xf32, #tpu.memory_space<vmem>>, %arg9: memref<32x512xf32, #tpu.memory_space<vmem>>) attributes {dimension_semantics = [#tpu.dimension_semantics<parallel>], iteration_bounds = array<i64: 1>, scalar_prefetch = 0 : i64, scratch_operands = 0 : i64, tpu.core_type = #tpu.core_type<tc>, window_params = [{transform_indices = @transform_0, window_bounds = array<i64: 8, 512>}, {pipeline_mode = #tpu.pipeline_mode<synchronous>, transform_indices = @transform_1, window_bounds = array<i64: 8, 8>}, {pipeline_mode = #tpu.pipeline_mode<synchronous>, transform_indices = @transform_2, window_bounds = array<i64: 8, 1>}, {pipeline_mode = #tpu.pipeline_mode<synchronous>, transform_indices = @transform_3, window_bounds = array<i64: 8, 1>}, {pipeline_mode = #tpu.pipeline_mode<synchronous>, transform_indices = @transform_4, window_bounds = array<i64: 32, 8>}, {pipeline_mode = #tpu.pipeline_mode<synchronous>, transform_indices = @transform_5, window_bounds = array<i64: 32, 1>}, {pipeline_mode = #tpu.pipeline_mode<synchronous>, transform_indices = @transform_6, window_bounds = array<i64: 32, 1>}, {transform_indices = @transform_7, window_bounds = array<i64: 8, 512>}, {transform_indices = @transform_8, window_bounds = array<i64: 32, 512>}]} {
    %c0 = arith.constant 0 : index
    %c0_0 = arith.constant 0 : index
    %0 = vector.load %arg2[%c0, %c0_0] : memref<8x8xf32, #tpu.memory_space<vmem>>, vector<8x8xf32>
    %c0_1 = arith.constant 0 : index
    %c0_2 = arith.constant 0 : index
    %1 = vector.load %arg1[%c0_1, %c0_2] : memref<8x512xf32, #tpu.memory_space<vmem>>, vector<8x512xf32>
    %cst = arith.constant dense<0.000000e+00> : vector<8x512xf32>
    %2 = tpu.matmul %0, %1, %cst {dimension_numbers = #tpu.dot_dimension_numbers<[1], [0], [0], [1], [0, 0, 1, 1], [], []>} : vector<8x8xf32>, vector<8x512xf32>, vector<8x512xf32> -> vector<8x512xf32>
    %c0_3 = arith.constant 0 : index
    %c0_4 = arith.constant 0 : index
    %3 = vector.load %arg3[%c0_3, %c0_4] : memref<8x1xf32, #tpu.memory_space<vmem>>, vector<8x1xf32>
    %4 = vector.broadcast %3 : vector<8x1xf32> to vector<8x512xf32>
    %5 = arith.addf %2, %4 : vector<8x512xf32>
    %cst_5 = arith.constant 0.000000e+00 : f32
    %6 = vector.broadcast %cst_5 : f32 to vector<8x512xf32>
    %7 = arith.cmpf oge, %5, %6 : vector<8x512xf32>
    %c0_6 = arith.constant 0 : index
    %c0_7 = arith.constant 0 : index
    %8 = vector.load %arg4[%c0_6, %c0_7] : memref<8x1xf32, #tpu.memory_space<vmem>>, vector<8x1xf32>
    %9 = vector.broadcast %8 : vector<8x1xf32> to vector<8x512xf32>
    %10 = arith.mulf %5, %9 : vector<8x512xf32>
    %11 = arith.select %7, %5, %10 : vector<8x512xi1>, vector<8x512xf32>
    %c0_8 = arith.constant 0 : index
    %c0_9 = arith.constant 0 : index
    %12 = vector.load %arg8[%c0_8, %c0_9] : memref<8x512xf32, #tpu.memory_space<vmem>>, vector<8x512xf32>
    tpu.vector_store %arg8[%c0_8, %c0_9], %11 {strides = array<i32>} : memref<8x512xf32, #tpu.memory_space<vmem>>, vector<8x512xf32>,
    %c0_10 = arith.constant 0 : index
    %c0_11 = arith.constant 0 : index
    %13 = vector.load %arg5[%c0_10, %c0_11] : memref<32x8xf32, #tpu.memory_space<vmem>>, vector<32x8xf32>
    %cst_12 = arith.constant dense<0.000000e+00> : vector<32x512xf32>
    %14 = tpu.matmul %13, %11, %cst_12 {dimension_numbers = #tpu.dot_dimension_numbers<[1], [0], [0], [1], [0, 0, 1, 1], [], []>} : vector<32x8xf32>, vector<8x512xf32>, vector<32x512xf32> -> vector<32x512xf32>
    %c0_13 = arith.constant 0 : index
    %c0_14 = arith.constant 0 : index
    %15 = vector.load %arg6[%c0_13, %c0_14] : memref<32x1xf32, #tpu.memory_space<vmem>>, vector<32x1xf32>
    %16 = vector.broadcast %15 : vector<32x1xf32> to vector<32x512xf32>
    %17 = arith.addf %14, %16 : vector<32x512xf32>
    %cst_15 = arith.constant 0.000000e+00 : f32
    %18 = vector.broadcast %cst_15 : f32 to vector<32x512xf32>
    %19 = arith.cmpf oge, %17, %18 : vector<32x512xf32>
    %c0_16 = arith.constant 0 : index
    %c0_17 = arith.constant 0 : index
    %20 = vector.load %arg7[%c0_16, %c0_17] : memref<32x1xf32, #tpu.memory_space<vmem>>, vector<32x1xf32>
    %21 = vector.broadcast %20 : vector<32x1xf32> to vector<32x512xf32>
    %22 = arith.mulf %17, %21 : vector<32x512xf32>
    %23 = arith.select %19, %17, %22 : vector<32x512xi1>, vector<32x512xf32>
    %c0_18 = arith.constant 0 : index
    %c0_19 = arith.constant 0 : index
    %24 = vector.load %arg9[%c0_18, %c0_19] : memref<32x512xf32, #tpu.memory_space<vmem>>, vector<32x512xf32>
    tpu.vector_store %arg9[%c0_18, %c0_19], %23 {strides = array<i32>} : memref<32x512xf32, #tpu.memory_space<vmem>>, vector<32x512xf32>,
    return
  }
  func.func @transform_0(%arg0: i32) -> (i32, i32) {
    %c0_i32 = arith.constant 0 : i32
    %c0_i32_0 = arith.constant 0 : i32
    return %c0_i32, %arg0 : i32, i32
  }
  func.func @transform_1(%arg0: i32) -> (i32, i32) {
    %c0_i32 = arith.constant 0 : i32
    %c0_i32_0 = arith.constant 0 : i32
    %c0_i32_1 = arith.constant 0 : i32
    return %c0_i32, %c0_i32_0 : i32, i32
  }
  func.func @transform_2(%arg0: i32) -> (i32, i32) {
    %c0_i32 = arith.constant 0 : i32
    %c0_i32_0 = arith.constant 0 : i32
    %c0_i32_1 = arith.constant 0 : i32
    return %c0_i32, %c0_i32_0 : i32, i32
  }
  func.func @transform_3(%arg0: i32) -> (i32, i32) {
    %c0_i32 = arith.constant 0 : i32
    %c0_i32_0 = arith.constant 0 : i32
    %c0_i32_1 = arith.constant 0 : i32
    return %c0_i32, %c0_i32_0 : i32, i32
  }
  func.func @transform_4(%arg0: i32) -> (i32, i32) {
    %c0_i32 = arith.constant 0 : i32
    %c0_i32_0 = arith.constant 0 : i32
    %c0_i32_1 = arith.constant 0 : i32
    return %c0_i32, %c0_i32_0 : i32, i32
  }
  func.func @transform_5(%arg0: i32) -> (i32, i32) {
    %c0_i32 = arith.constant 0 : i32
    %c0_i32_0 = arith.constant 0 : i32
    %c0_i32_1 = arith.constant 0 : i32
    return %c0_i32, %c0_i32_0 : i32, i32
  }
  func.func @transform_6(%arg0: i32) -> (i32, i32) {
    %c0_i32 = arith.constant 0 : i32
    %c0_i32_0 = arith.constant 0 : i32
    %c0_i32_1 = arith.constant 0 : i32
    return %c0_i32, %c0_i32_0 : i32, i32
  }
  func.func @transform_7(%arg0: i32) -> (i32, i32) {
    %c0_i32 = arith.constant 0 : i32
    %c0_i32_0 = arith.constant 0 : i32
    return %c0_i32, %arg0 : i32, i32
  }
  func.func @transform_8(%arg0: i32) -> (i32, i32) {
    %c0_i32 = arith.constant 0 : i32
    %c0_i32_0 = arith.constant 0 : i32
    return %c0_i32, %arg0 : i32, i32
  }
}

module attributes {stable_mosaic.version = 11 : i64} {
  func.func @_mm_prelu_res_kernel(%arg0: i32, %arg1: memref<288x512xbf16, #tpu.memory_space<vmem>>, %arg2: memref<8x288xbf16, #tpu.memory_space<vmem>>, %arg3: memref<8x1xf32, #tpu.memory_space<vmem>>, %arg4: memref<8x1xf32, #tpu.memory_space<vmem>>, %arg5: memref<8x512xf32, #tpu.memory_space<vmem>>, %arg6: memref<8x512xf32, #tpu.memory_space<vmem>>) attributes {dimension_semantics = [#tpu.dimension_semantics<parallel>], iteration_bounds = array<i64: 1>, scalar_prefetch = 0 : i64, scratch_operands = 0 : i64, tpu.core_type = #tpu.core_type<tc>, window_params = [{transform_indices = @transform_0, window_bounds = array<i64: 288, 512>}, {pipeline_mode = #tpu.pipeline_mode<synchronous>, transform_indices = @transform_1, window_bounds = array<i64: 8, 288>}, {pipeline_mode = #tpu.pipeline_mode<synchronous>, transform_indices = @transform_2, window_bounds = array<i64: 8, 1>}, {pipeline_mode = #tpu.pipeline_mode<synchronous>, transform_indices = @transform_3, window_bounds = array<i64: 8, 1>}, {transform_indices = @transform_4, window_bounds = array<i64: 8, 512>}, {transform_indices = @transform_5, window_bounds = array<i64: 8, 512>}]} {
    %c0 = arith.constant 0 : index
    %c0_0 = arith.constant 0 : index
    %0 = vector.load %arg2[%c0, %c0_0] : memref<8x288xbf16, #tpu.memory_space<vmem>>, vector<8x288xbf16>
    %c0_1 = arith.constant 0 : index
    %c0_2 = arith.constant 0 : index
    %1 = vector.load %arg1[%c0_1, %c0_2] : memref<288x512xbf16, #tpu.memory_space<vmem>>, vector<288x512xbf16>
    %cst = arith.constant dense<0.000000e+00> : vector<8x512xf32>
    %2 = tpu.matmul %0, %1, %cst {dimension_numbers = #tpu.dot_dimension_numbers<[1], [0], [0], [1], [0, 0, 1, 1], [], []>} : vector<8x288xbf16>, vector<288x512xbf16>, vector<8x512xf32> -> vector<8x512xf32>
    %c0_3 = arith.constant 0 : index
    %c0_4 = arith.constant 0 : index
    %3 = vector.load %arg3[%c0_3, %c0_4] : memref<8x1xf32, #tpu.memory_space<vmem>>, vector<8x1xf32>
    %4 = vector.broadcast %3 : vector<8x1xf32> to vector<8x512xf32>
    %5 = arith.addf %2, %4 : vector<8x512xf32>
    %cst_5 = arith.constant 0.000000e+00 : f32
    %6 = vector.broadcast %cst_5 : f32 to vector<8x512xf32>
    %7 = arith.cmpf oge, %5, %6 : vector<8x512xf32>
    %c0_6 = arith.constant 0 : index
    %c0_7 = arith.constant 0 : index
    %8 = vector.load %arg4[%c0_6, %c0_7] : memref<8x1xf32, #tpu.memory_space<vmem>>, vector<8x1xf32>
    %9 = vector.broadcast %8 : vector<8x1xf32> to vector<8x512xf32>
    %10 = arith.mulf %5, %9 : vector<8x512xf32>
    %11 = arith.select %7, %5, %10 : vector<8x512xi1>, vector<8x512xf32>
    %c0_8 = arith.constant 0 : index
    %c0_9 = arith.constant 0 : index
    %12 = vector.load %arg5[%c0_8, %c0_9] : memref<8x512xf32, #tpu.memory_space<vmem>>, vector<8x512xf32>
    %13 = arith.subf %11, %12 : vector<8x512xf32>
    %c0_10 = arith.constant 0 : index
    %c0_11 = arith.constant 0 : index
    %14 = vector.load %arg6[%c0_10, %c0_11] : memref<8x512xf32, #tpu.memory_space<vmem>>, vector<8x512xf32>
    tpu.vector_store %arg6[%c0_10, %c0_11], %13 {strides = array<i32>} : memref<8x512xf32, #tpu.memory_space<vmem>>, vector<8x512xf32>,
    return
  }
  func.func @transform_0(%arg0: i32) -> (i32, i32) {
    %c0_i32 = arith.constant 0 : i32
    %c0_i32_0 = arith.constant 0 : i32
    return %c0_i32, %arg0 : i32, i32
  }
  func.func @transform_1(%arg0: i32) -> (i32, i32) {
    %c0_i32 = arith.constant 0 : i32
    %c0_i32_0 = arith.constant 0 : i32
    %c0_i32_1 = arith.constant 0 : i32
    return %c0_i32, %c0_i32_0 : i32, i32
  }
  func.func @transform_2(%arg0: i32) -> (i32, i32) {
    %c0_i32 = arith.constant 0 : i32
    %c0_i32_0 = arith.constant 0 : i32
    %c0_i32_1 = arith.constant 0 : i32
    return %c0_i32, %c0_i32_0 : i32, i32
  }
  func.func @transform_3(%arg0: i32) -> (i32, i32) {
    %c0_i32 = arith.constant 0 : i32
    %c0_i32_0 = arith.constant 0 : i32
    %c0_i32_1 = arith.constant 0 : i32
    return %c0_i32, %c0_i32_0 : i32, i32
  }
  func.func @transform_4(%arg0: i32) -> (i32, i32) {
    %c0_i32 = arith.constant 0 : i32
    %c0_i32_0 = arith.constant 0 : i32
    return %c0_i32, %arg0 : i32, i32
  }
  func.func @transform_5(%arg0: i32) -> (i32, i32) {
    %c0_i32 = arith.constant 0 : i32
    %c0_i32_0 = arith.constant 0 : i32
    return %c0_i32, %arg0 : i32, i32
  }
}

module attributes {stable_mosaic.version = 11 : i64} {
  func.func @_mm_prelu_res_kernel(%arg0: i32, %arg1: memref<72x512xbf16, #tpu.memory_space<vmem>>, %arg2: memref<32x72xbf16, #tpu.memory_space<vmem>>, %arg3: memref<32x1xf32, #tpu.memory_space<vmem>>, %arg4: memref<32x1xf32, #tpu.memory_space<vmem>>, %arg5: memref<32x512xf32, #tpu.memory_space<vmem>>, %arg6: memref<32x512xf32, #tpu.memory_space<vmem>>) attributes {dimension_semantics = [#tpu.dimension_semantics<parallel>], iteration_bounds = array<i64: 1>, scalar_prefetch = 0 : i64, scratch_operands = 0 : i64, tpu.core_type = #tpu.core_type<tc>, window_params = [{transform_indices = @transform_0, window_bounds = array<i64: 72, 512>}, {pipeline_mode = #tpu.pipeline_mode<synchronous>, transform_indices = @transform_1, window_bounds = array<i64: 32, 72>}, {pipeline_mode = #tpu.pipeline_mode<synchronous>, transform_indices = @transform_2, window_bounds = array<i64: 32, 1>}, {pipeline_mode = #tpu.pipeline_mode<synchronous>, transform_indices = @transform_3, window_bounds = array<i64: 32, 1>}, {transform_indices = @transform_4, window_bounds = array<i64: 32, 512>}, {transform_indices = @transform_5, window_bounds = array<i64: 32, 512>}]} {
    %c0 = arith.constant 0 : index
    %c0_0 = arith.constant 0 : index
    %0 = vector.load %arg2[%c0, %c0_0] : memref<32x72xbf16, #tpu.memory_space<vmem>>, vector<32x72xbf16>
    %c0_1 = arith.constant 0 : index
    %c0_2 = arith.constant 0 : index
    %1 = vector.load %arg1[%c0_1, %c0_2] : memref<72x512xbf16, #tpu.memory_space<vmem>>, vector<72x512xbf16>
    %cst = arith.constant dense<0.000000e+00> : vector<32x512xf32>
    %2 = tpu.matmul %0, %1, %cst {dimension_numbers = #tpu.dot_dimension_numbers<[1], [0], [0], [1], [0, 0, 1, 1], [], []>} : vector<32x72xbf16>, vector<72x512xbf16>, vector<32x512xf32> -> vector<32x512xf32>
    %c0_3 = arith.constant 0 : index
    %c0_4 = arith.constant 0 : index
    %3 = vector.load %arg3[%c0_3, %c0_4] : memref<32x1xf32, #tpu.memory_space<vmem>>, vector<32x1xf32>
    %4 = vector.broadcast %3 : vector<32x1xf32> to vector<32x512xf32>
    %5 = arith.addf %2, %4 : vector<32x512xf32>
    %cst_5 = arith.constant 0.000000e+00 : f32
    %6 = vector.broadcast %cst_5 : f32 to vector<32x512xf32>
    %7 = arith.cmpf oge, %5, %6 : vector<32x512xf32>
    %c0_6 = arith.constant 0 : index
    %c0_7 = arith.constant 0 : index
    %8 = vector.load %arg4[%c0_6, %c0_7] : memref<32x1xf32, #tpu.memory_space<vmem>>, vector<32x1xf32>
    %9 = vector.broadcast %8 : vector<32x1xf32> to vector<32x512xf32>
    %10 = arith.mulf %5, %9 : vector<32x512xf32>
    %11 = arith.select %7, %5, %10 : vector<32x512xi1>, vector<32x512xf32>
    %c0_8 = arith.constant 0 : index
    %c0_9 = arith.constant 0 : index
    %12 = vector.load %arg5[%c0_8, %c0_9] : memref<32x512xf32, #tpu.memory_space<vmem>>, vector<32x512xf32>
    %13 = arith.addf %11, %12 : vector<32x512xf32>
    %c0_10 = arith.constant 0 : index
    %c0_11 = arith.constant 0 : index
    %14 = vector.load %arg6[%c0_10, %c0_11] : memref<32x512xf32, #tpu.memory_space<vmem>>, vector<32x512xf32>
    tpu.vector_store %arg6[%c0_10, %c0_11], %13 {strides = array<i32>} : memref<32x512xf32, #tpu.memory_space<vmem>>, vector<32x512xf32>,
    return
  }
  func.func @transform_0(%arg0: i32) -> (i32, i32) {
    %c0_i32 = arith.constant 0 : i32
    %c0_i32_0 = arith.constant 0 : i32
    return %c0_i32, %arg0 : i32, i32
  }
  func.func @transform_1(%arg0: i32) -> (i32, i32) {
    %c0_i32 = arith.constant 0 : i32
    %c0_i32_0 = arith.constant 0 : i32
    %c0_i32_1 = arith.constant 0 : i32
    return %c0_i32, %c0_i32_0 : i32, i32
  }
  func.func @transform_2(%arg0: i32) -> (i32, i32) {
    %c0_i32 = arith.constant 0 : i32
    %c0_i32_0 = arith.constant 0 : i32
    %c0_i32_1 = arith.constant 0 : i32
    return %c0_i32, %c0_i32_0 : i32, i32
  }
  func.func @transform_3(%arg0: i32) -> (i32, i32) {
    %c0_i32 = arith.constant 0 : i32
    %c0_i32_0 = arith.constant 0 : i32
    %c0_i32_1 = arith.constant 0 : i32
    return %c0_i32, %c0_i32_0 : i32, i32
  }
  func.func @transform_4(%arg0: i32) -> (i32, i32) {
    %c0_i32 = arith.constant 0 : i32
    %c0_i32_0 = arith.constant 0 : i32
    return %c0_i32, %arg0 : i32, i32
  }
  func.func @transform_5(%arg0: i32) -> (i32, i32) {
    %c0_i32 = arith.constant 0 : i32
    %c0_i32_0 = arith.constant 0 : i32
    return %c0_i32, %arg0 : i32, i32
  }
}

</mosaic_0001>

<llo_original>
// kernel: dense_projection_forward.3
$region0: #{dense_projection_forward.3}
  #allocation0 [shape = 'u32[]', space=smem, size = 0x4, offset = 0x4, fixed_abs, tag = 'smem constant byte address 0x4 - core index']
  #allocation1 [shape = 'u32[144,128]{1,0:T(1,128)}', space=vmem, size = 0x12000, scoped, tag = 'internal scratch']
  %s0 = inlined_call_operand.vmem [shape: f32[8,512], index: 0, kind: input, shape index: {}]
  %s1 = inlined_call_operand.hbm [shape: f32[8,8], index: 1, kind: input, shape index: {}]
  %s2 = inlined_call_operand.vmem [shape: f32[8,1], index: 2, kind: input, shape index: {}]
  %s3 = inlined_call_operand.vmem [shape: f32[8,1], index: 3, kind: input, shape index: {}]
  %s4 = inlined_call_operand.vmem [shape: f32[32,8], index: 4, kind: input, shape index: {}]
  %s5 = inlined_call_operand.vmem [shape: f32[32,1], index: 5, kind: input, shape index: {}]
  %s6 = inlined_call_operand.vmem [shape: f32[32,1], index: 6, kind: input, shape index: {}]
  %s7 = inlined_call_operand.vmem [shape: f32[8,512], index: 7, kind: output, shape index: {0}]
  %s8 = inlined_call_operand.vmem [shape: f32[32,512], index: 8, kind: output, shape index: {1}]
  %9 = xla_tuple %s7, %s8
  %s10 = sld [smem:[#allocation0]]
  $region50: #{dense_projection_forward.3} parent=0
    _
  %s12 = ssub.s32 1, %s10
  %s13 = scalar_select 0, %s12, %s10
  $region1: #{dense_projection_forward.3} parent=0
    #allocation2 [shape = 'u8[4096]{0}', space=vmem, size = 0x1000, scoped, tag = 'input window, operand 1, single buffered']
    #allocation3 [shape = 's32[1]{0}', space=sflag, size = 0x4, scoped, tag = 'scoped memory for dense_projection_forward.3']
    %14 = vsyncpa [#allocation3], 0
    // Predicated region
    $region2: #{dense_projection_forward.3} parent=1 // pred_check
      _
    $region3: #{dense_projection_forward.3} parent=1 // pred_check_branch
      %16 = sbr.rel (0) target = $region5
    $region4: #{dense_projection_forward.3} parent=1 // pred_region
      _
    $region5: #{dense_projection_forward.3} parent=1 // pred_fallthru
      _
    // Predicated region
    $region6: #{dense_projection_forward.3} parent=1 // pred_check
      _
    $region7: #{dense_projection_forward.3} parent=1 // pred_check_branch
      %18 = sbr.rel (0) target = $region9
    $region8: #{dense_projection_forward.3} parent=1 // pred_region
      %s20 = ssub.s32 128, 128
      %21 = vsyncadd [#allocation3], %s20
      %s23 = sshll.u32 [#allocation2], 4
      %s24 = int_to_ptr.vmem [resolvable:$true] %s23
      %26 = dma.hbm_to_vmem [thread:$0]  %s1, 128, %s24, [#allocation3]
    $region9: #{dense_projection_forward.3} parent=1 // pred_fallthru
      _
    // Predicated region
    $region10: #{dense_projection_forward.3} parent=1 // pred_check
      _
    $region11: #{dense_projection_forward.3} parent=1 // pred_check_branch
      %28 = sbr.rel (0) target = $region13
    $region12: #{dense_projection_forward.3} parent=1 // pred_region
      _
    $region13: #{dense_projection_forward.3} parent=1 // pred_fallthru
      _
    // Predicated region
    $region14: #{dense_projection_forward.3} parent=1 // pred_check
      _
    $region15: #{dense_projection_forward.3} parent=1 // pred_check_branch
      %30 = sbr.rel (0) target = $region17
    $region16: #{dense_projection_forward.3} parent=1 // pred_region
      _
    $region17: #{dense_projection_forward.3} parent=1 // pred_fallthru
      _
    // Predicated region
    $region18: #{dense_projection_forward.3} parent=1 // pred_check
      _
    $region19: #{dense_projection_forward.3} parent=1 // pred_check_branch
      %32 = sbr.rel (0) target = $region21
    $region20: #{dense_projection_forward.3} parent=1 // pred_region
      _
    $region21: #{dense_projection_forward.3} parent=1 // pred_fallthru
      _
    // Predicated region
    $region22: #{dense_projection_forward.3} parent=1 // pred_check
      _
    $region23: #{dense_projection_forward.3} parent=1 // pred_check_branch
      %34 = sbr.rel (0) target = $region25
    $region24: #{dense_projection_forward.3} parent=1 // pred_region
      _
    $region25: #{dense_projection_forward.3} parent=1 // pred_fallthru
      _
    // Predicated region
    $region26: #{dense_projection_forward.3} parent=1 // pred_check
      _
    $region27: #{dense_projection_forward.3} parent=1 // pred_check_branch
      %36 = sbr.rel (0) target = $region29
    $region28: #{dense_projection_forward.3} parent=1 // pred_region
      _
    $region29: #{dense_projection_forward.3} parent=1 // pred_fallthru
      _
    // Predicated region
    $region30: #{dense_projection_forward.3} parent=1 // pred_check
      _
    $region31: #{dense_projection_forward.3} parent=1 // pred_check_branch
      %38 = sbr.rel (0) target = $region33
    $region32: #{dense_projection_forward.3} parent=1 // pred_region
      %39 = dma.done [#allocation3], 128
    $region33: #{dense_projection_forward.3} parent=1 // pred_fallthru
      _
    %v40 = vld [vmem:[#allocation2] sm:$0xff]
    %v41 = vld [vmem:[%s0] sm:$0xff]
    %v42 = vld [vmem:[%s0 + $0x8] sm:$0xff]
    %v43 = vld [vmem:[%s0 + $0x10] sm:$0xff]
    %v44 = vld [vmem:[%s0 + $0x18] sm:$0xff]
    %v45 = vld [vmem:[%s2] sm:$0xff]
    %47 = vset.pattern.permute.xlu0 0
    %48 = vperm.xlu0 %47, %v45
    %v49 = vpop.permute.xlu0 %48
    %vm51 = vcmask 64512
    %v53 = vsel %vm51, %v40, 0
    %55 = vmatprep.subr.mxu0 %v42
    %56 = vmatpush1.msra.mxu0 %v41
    %57 = vmatprep.subr.mxu0 0.0
    %58 = vmatpush1.msra.mxu0 0.0
    %59 = vmatprep.subr.mxu0 0.0
    %60 = vmatpush1.msra.mxu0 0.0
    %61 = vmatprep.subr.mxu0 0.0
    %62 = vmatpush1.msra.mxu0 0.0
    %63 = vmatprep.subr.mxu0 0.0
    %64 = vmatpush1.msra.mxu0 0.0
    %65 = vmatprep.subr.mxu0 0.0
    %66 = vmatpush1.msra.mxu0 0.0
    %67 = vmatprep.subr.mxu0 0.0
    %68 = vmatpush1.msra.mxu0 0.0
    %69 = vmatprep.subr.mxu0 0.0
    %70 = vmatpush1.msra.mxu0 0.0
    %71 = vmatprep.subr.mxu0 0.0
    %72 = vmatpush1.msra.mxu0 0.0
    %73 = vmatprep.subr.mxu0 0.0
    %74 = vmatpush1.msra.mxu0 0.0
    %75 = vmatprep.subr.mxu0 0.0
    %76 = vmatpush1.msra.mxu0 0.0
    %77 = vmatprep.subr.mxu0 0.0
    %78 = vmatpush1.msra.mxu0 0.0
    %79 = vmatprep.subr.mxu0 0.0
    %80 = vmatpush1.msra.mxu0 0.0
    %81 = vmatprep.subr.mxu0 0.0
    %82 = vmatpush1.msra.mxu0 0.0
    %83 = vmatprep.subr.mxu0 0.0
    %84 = vmatpush1.msra.mxu0 0.0
    %85 = vmatprep.subr.mxu0 0.0
    %86 = vmatpush1.msra.mxu0 0.0
    %87 = vmatprep.subr.mxu0 0.0
    %88 = vmatpush1.msra.mxu0 0.0
    %89 = vmatprep.subr.mxu0 0.0
    %90 = vmatpush1.msra.mxu0 0.0
    %91 = vmatprep.subr.mxu0 0.0
    %92 = vmatpush1.msra.mxu0 0.0
    %93 = vmatprep.subr.mxu0 0.0
    %94 = vmatpush1.msra.mxu0 0.0
    %95 = vmatprep.subr.mxu0 0.0
    %96 = vmatpush1.msra.mxu0 0.0
    %97 = vmatprep.subr.mxu0 0.0
    %98 = vmatpush1.msra.mxu0 0.0
    %99 = vmatprep.subr.mxu0 0.0
    %100 = vmatpush1.msra.mxu0 0.0
    %101 = vmatprep.subr.mxu0 0.0
    %102 = vmatpush1.msra.mxu0 0.0
    %103 = vmatprep.subr.mxu0 0.0
    %104 = vmatpush1.msra.mxu0 0.0
    %105 = vmatprep.subr.mxu0 0.0
    %106 = vmatpush1.msra.mxu0 0.0
    %107 = vmatprep.subr.mxu0 0.0
    %108 = vmatpush1.msra.mxu0 0.0
    %109 = vmatprep.subr.mxu0 0.0
    %110 = vmatpush1.msra.mxu0 0.0
    %111 = vmatprep.subr.mxu0 0.0
    %112 = vmatpush1.msra.mxu0 0.0
    %113 = vmatprep.subr.mxu0 0.0
    %114 = vmatpush1.msra.mxu0 0.0
    %115 = vmatprep.subr.mxu0 0.0
    %116 = vmatpush1.msra.mxu0 0.0
    %117 = vmatprep.subr.mxu0 0.0
    %118 = vmatpush1.msra.mxu0 0.0
    %119 = vmatprep.mubr.f32.mxu0 0.0
    %120 = vmatmul.mubr.f32.gmra.mrb[0].mxu0 %v53
    %v121 = vpop.f32.mrb[0].mxu0
    %v122 = vadd.f32 %v49, %v121
    %v123 = vpop.f32.mrb[0].mxu0
    %v124 = vadd.f32 %v49, %v123
    %125 = vdwg.mxu0
    %126 = vmatprep.subr.mxu0 %v44
    %127 = vmatpush1.msra.mxu0 %v43
    %128 = vmatprep.subr.mxu0 0.0
    %129 = vmatpush1.msra.mxu0 0.0
    %130 = vmatprep.subr.mxu0 0.0
    %131 = vmatpush1.msra.mxu0 0.0
    %132 = vmatprep.subr.mxu0 0.0
    %133 = vmatpush1.msra.mxu0 0.0
    %134 = vmatprep.subr.mxu0 0.0
    %135 = vmatpush1.msra.mxu0 0.0
    %136 = vmatprep.subr.mxu0 0.0
    %137 = vmatpush1.msra.mxu0 0.0
    %138 = vmatprep.subr.mxu0 0.0
    %139 = vmatpush1.msra.mxu0 0.0
    %140 = vmatprep.subr.mxu0 0.0
    %141 = vmatpush1.msra.mxu0 0.0
    %142 = vmatprep.subr.mxu0 0.0
    %143 = vmatpush1.msra.mxu0 0.0
    %144 = vmatprep.subr.mxu0 0.0
    %145 = vmatpush1.msra.mxu0 0.0
    %146 = vmatprep.subr.mxu0 0.0
    %147 = vmatpush1.msra.mxu0 0.0
    %148 = vmatprep.subr.mxu0 0.0
    %149 = vmatpush1.msra.mxu0 0.0
    %150 = vmatprep.subr.mxu0 0.0
    %151 = vmatpush1.msra.mxu0 0.0
    %152 = vmatprep.subr.mxu0 0.0
    %153 = vmatpush1.msra.mxu0 0.0
    %154 = vmatprep.subr.mxu0 0.0
    %155 = vmatpush1.msra.mxu0 0.0
    %156 = vmatprep.subr.mxu0 0.0
    %157 = vmatpush1.msra.mxu0 0.0
    %158 = vmatprep.subr.mxu0 0.0
    %159 = vmatpush1.msra.mxu0 0.0
    %160 = vmatprep.subr.mxu0 0.0
    %161 = vmatpush1.msra.mxu0 0.0
    %162 = vmatprep.subr.mxu0 0.0
    %163 = vmatpush1.msra.mxu0 0.0
    %164 = vmatprep.subr.mxu0 0.0
    %165 = vmatpush1.msra.mxu0 0.0
    %166 = vmatprep.subr.mxu0 0.0
    %167 = vmatpush1.msra.mxu0 0.0
    %168 = vmatprep.subr.mxu0 0.0
    %169 = vmatpush1.msra.mxu0 0.0
    %170 = vmatprep.subr.mxu0 0.0
    %171 = vmatpush1.msra.mxu0 0.0
    %172 = vmatprep.subr.mxu0 0.0
    %173 = vmatpush1.msra.mxu0 0.0
    %174 = vmatprep.subr.mxu0 0.0
    %175 = vmatpush1.msra.mxu0 0.0
    %176 = vmatprep.subr.mxu0 0.0
    %177 = vmatpush1.msra.mxu0 0.0
    %178 = vmatprep.subr.mxu0 0.0
    %179 = vmatpush1.msra.mxu0 0.0
    %180 = vmatprep.subr.mxu0 0.0
    %181 = vmatpush1.msra.mxu0 0.0
    %182 = vmatprep.subr.mxu0 0.0
    %183 = vmatpush1.msra.mxu0 0.0
    %184 = vmatprep.subr.mxu0 0.0
    %185 = vmatpush1.msra.mxu0 0.0
    %186 = vmatprep.subr.mxu0 0.0
    %187 = vmatpush1.msra.mxu0 0.0
    %188 = vmatprep.subr.mxu0 0.0
    %189 = vmatpush1.msra.mxu0 0.0
    %190 = vmatprep.mubr.f32.mxu0 0.0
    %191 = vmatmul.mubr.f32.gmra.mrb[0].mxu0 %v53
    %v192 = vpop.f32.mrb[0].mxu0
    %v193 = vadd.f32 %v49, %v192
    %v194 = vpop.f32.mrb[0].mxu0
    %v195 = vadd.f32 %v49, %v194
    %196 = vdwg.mxu0
    %vm197 = vcmp.ge.f32.partialorder %v122, 0.0
    %vm198 = vcmp.ge.f32.partialorder %v124, 0.0
    %vm199 = vcmp.ge.f32.partialorder %v193, 0.0
    %vm200 = vcmp.ge.f32.partialorder %v195, 0.0
    %v201 = vld [vmem:[%s3] sm:$0xff]
    %203 = vset.pattern.permute.xlu0 0
    %204 = vperm.xlu0 %203, %v201
    %v205 = vpop.permute.xlu0 %204
    %v207 = vmul.f32 %v122, %v205
    %v208 = vmul.f32 %v124, %v205
    %v209 = vmul.f32 %v193, %v205
    %v210 = vmul.f32 %v195, %v205
    %v211 = vsel %vm197, %v122, %v207
    %v212 = vsel %vm198, %v124, %v208
    %v213 = vsel %vm199, %v193, %v209
    %v214 = vsel %vm200, %v195, %v210
    %215 = vst [vmem:[%s7] sm:$0xff] %v211
    %216 = vst [vmem:[%s7 + $0x8] sm:$0xff] %v212
    %217 = vst [vmem:[%s7 + $0x10] sm:$0xff] %v213
    %218 = vst [vmem:[%s7 + $0x18] sm:$0xff] %v214
    %v219 = vld [vmem:[%s4] sm:$0xff]
    %v220 = vld [vmem:[%s4 + $0x8] sm:$0xff]
    %v221 = vld [vmem:[%s4 + $0x10] sm:$0xff]
    %v222 = vld [vmem:[%s4 + $0x18] sm:$0xff]
    %v223 = vld [vmem:[%s5] sm:$0xff]
    %v224 = vld [vmem:[%s5 + $0x8] sm:$0xff]
    %v225 = vld [vmem:[%s5 + $0x10] sm:$0xff]
    %v226 = vld [vmem:[%s5 + $0x18] sm:$0xff]
    %228 = vset.pattern.permute.xlu0 0
    %229 = vperm.xlu0 %228, %v223
    %v230 = vpop.permute.xlu0 %229
    %233 = vset.pattern.permute.xlu0 0
    %234 = vperm.xlu0 %233, %v224
    %v235 = vpop.permute.xlu0 %234
    %238 = vset.pattern.permute.xlu0 0
    %239 = vperm.xlu0 %238, %v225
    %v240 = vpop.permute.xlu0 %239
    %243 = vset.pattern.permute.xlu0 0
    %244 = vperm.xlu0 %243, %v226
    %v245 = vpop.permute.xlu0 %244
    %v248 = vsel %vm51, %v219, 0
    %v251 = vsel %vm51, %v220, 0
    %v254 = vsel %vm51, %v221, 0
    %v257 = vsel %vm51, %v222, 0
    %259 = vmatprep.subr.mxu0 %v212
    %260 = vmatpush1.msra.mxu0 %v211
    %261 = vmatprep.subr.mxu0 0.0
    %262 = vmatpush1.msra.mxu0 0.0
    %263 = vmatprep.subr.mxu0 0.0
    %264 = vmatpush1.msra.mxu0 0.0
    %265 = vmatprep.subr.mxu0 0.0
    %266 = vmatpush1.msra.mxu0 0.0
    %267 = vmatprep.subr.mxu0 0.0
    %268 = vmatpush1.msra.mxu0 0.0
    %269 = vmatprep.subr.mxu0 0.0
    %270 = vmatpush1.msra.mxu0 0.0
    %271 = vmatprep.subr.mxu0 0.0
    %272 = vmatpush1.msra.mxu0 0.0
    %273 = vmatprep.subr.mxu0 0.0
    %274 = vmatpush1.msra.mxu0 0.0
    %275 = vmatprep.subr.mxu0 0.0
    %276 = vmatpush1.msra.mxu0 0.0
    %277 = vmatprep.subr.mxu0 0.0
    %278 = vmatpush1.msra.mxu0 0.0
    %279 = vmatprep.subr.mxu0 0.0
    %280 = vmatpush1.msra.mxu0 0.0
    %281 = vmatprep.subr.mxu0 0.0
    %282 = vmatpush1.msra.mxu0 0.0
    %283 = vmatprep.subr.mxu0 0.0
    %284 = vmatpush1.msra.mxu0 0.0
    %285 = vmatprep.subr.mxu0 0.0
    %286 = vmatpush1.msra.mxu0 0.0
    %287 = vmatprep.subr.mxu0 0.0
    %288 = vmatpush1.msra.mxu0 0.0
    %289 = vmatprep.subr.mxu0 0.0
    %290 = vmatpush1.msra.mxu0 0.0
    %291 = vmatprep.subr.mxu0 0.0
    %292 = vmatpush1.msra.mxu0 0.0
    %293 = vmatprep.subr.mxu0 0.0
    %294 = vmatpush1.msra.mxu0 0.0
    %295 = vmatprep.subr.mxu0 0.0
    %296 = vmatpush1.msra.mxu0 0.0
    %297 = vmatprep.subr.mxu0 0.0
    %298 = vmatpush1.msra.mxu0 0.0
    %299 = vmatprep.subr.mxu0 0.0
    %300 = vmatpush1.msra.mxu0 0.0
    %301 = vmatprep.subr.mxu0 0.0
    %302 = vmatpush1.msra.mxu0 0.0
    %303 = vmatprep.subr.mxu0 0.0
    %304 = vmatpush1.msra.mxu0 0.0
    %305 = vmatprep.subr.mxu0 0.0
    %306 = vmatpush1.msra.mxu0 0.0
    %307 = vmatprep.subr.mxu0 0.0
    %308 = vmatpush1.msra.mxu0 0.0
    %309 = vmatprep.subr.mxu0 0.0
    %310 = vmatpush1.msra.mxu0 0.0
    %311 = vmatprep.subr.mxu0 0.0
    %312 = vmatpush1.msra.mxu0 0.0
    %313 = vmatprep.subr.mxu0 0.0
    %314 = vmatpush1.msra.mxu0 0.0
    %315 = vmatprep.subr.mxu0 0.0
    %316 = vmatpush1.msra.mxu0 0.0
    %317 = vmatprep.subr.mxu0 0.0
    %318 = vmatpush1.msra.mxu0 0.0
    %319 = vmatprep.subr.mxu0 0.0
    %320 = vmatpush1.msra.mxu0 0.0
    %321 = vmatprep.subr.mxu0 0.0
    %322 = vmatpush1.msra.mxu0 0.0
    %323 = vmatprep.mubr.f32.mxu0 0.0
    %324 = vmatmul.mubr.f32.gmra.mrb[0].mxu0 %v248
    %v325 = vpop.f32.mrb[0].mxu0
    %v326 = vadd.f32 %v230, %v325
    %v327 = vpop.f32.mrb[0].mxu0
    %v328 = vadd.f32 %v230, %v327
    %329 = vmatprep.mubr.f32.mxu0 0.0
    %330 = vmatmul.mubr.f32.gmra.mrb[0].mxu0 %v251
    %v331 = vpop.f32.mrb[0].mxu0
    %v332 = vadd.f32 %v235, %v331
    %v333 = vpop.f32.mrb[0].mxu0
    %v334 = vadd.f32 %v235, %v333
    %335 = vmatprep.mubr.f32.mxu0 0.0
    %336 = vmatmul.mubr.f32.gmra.mrb[0].mxu0 %v254
    %v337 = vpop.f32.mrb[0].mxu0
    %v338 = vadd.f32 %v240, %v337
    %v339 = vpop.f32.mrb[0].mxu0
    %v340 = vadd.f32 %v240, %v339
    %341 = vmatprep.mubr.f32.mxu0 0.0
    %342 = vmatmul.mubr.f32.gmra.mrb[0].mxu0 %v257
    %v343 = vpop.f32.mrb[0].mxu0
    %v344 = vadd.f32 %v245, %v343
    %v345 = vpop.f32.mrb[0].mxu0
    %v346 = vadd.f32 %v245, %v345
    %347 = vdwg.mxu0
    %348 = vmatprep.subr.mxu0 %v214
    %349 = vmatpush1.msra.mxu0 %v213
    %350 = vmatprep.subr.mxu0 0.0
    %351 = vmatpush1.msra.mxu0 0.0
    %352 = vmatprep.subr.mxu0 0.0
    %353 = vmatpush1.msra.mxu0 0.0
    %354 = vmatprep.subr.mxu0 0.0
    %355 = vmatpush1.msra.mxu0 0.0
    %356 = vmatprep.subr.mxu0 0.0
    %357 = vmatpush1.msra.mxu0 0.0
    %358 = vmatprep.subr.mxu0 0.0
    %359 = vmatpush1.msra.mxu0 0.0
    %360 = vmatprep.subr.mxu0 0.0
    %361 = vmatpush1.msra.mxu0 0.0
    %362 = vmatprep.subr.mxu0 0.0
    %363 = vmatpush1.msra.mxu0 0.0
    %364 = vmatprep.subr.mxu0 0.0
    %365 = vmatpush1.msra.mxu0 0.0
    %366 = vmatprep.subr.mxu0 0.0
    %367 = vmatpush1.msra.mxu0 0.0
    %368 = vmatprep.subr.mxu0 0.0
    %369 = vmatpush1.msra.mxu0 0.0
    %370 = vmatprep.subr.mxu0 0.0
    %371 = vmatpush1.msra.mxu0 0.0
    %372 = vmatprep.subr.mxu0 0.0
    %373 = vmatpush1.msra.mxu0 0.0
    %374 = vmatprep.subr.mxu0 0.0
    %375 = vmatpush1.msra.mxu0 0.0
    %376 = vmatprep.subr.mxu0 0.0
    %377 = vmatpush1.msra.mxu0 0.0
    %378 = vmatprep.subr.mxu0 0.0
    %379 = vmatpush1.msra.mxu0 0.0
    %380 = vmatprep.subr.mxu0 0.0
    %381 = vmatpush1.msra.mxu0 0.0
    %382 = vmatprep.subr.mxu0 0.0
    %383 = vmatpush1.msra.mxu0 0.0
    %384 = vmatprep.subr.mxu0 0.0
    %385 = vmatpush1.msra.mxu0 0.0
    %386 = vmatprep.subr.mxu0 0.0
    %387 = vmatpush1.msra.mxu0 0.0
    %388 = vmatprep.subr.mxu0 0.0
    %389 = vmatpush1.msra.mxu0 0.0
    %390 = vmatprep.subr.mxu0 0.0
    %391 = vmatpush1.msra.mxu0 0.0
    %392 = vmatprep.subr.mxu0 0.0
    %393 = vmatpush1.msra.mxu0 0.0
    %394 = vmatprep.subr.mxu0 0.0
    %395 = vmatpush1.msra.mxu0 0.0
    %396 = vmatprep.subr.mxu0 0.0
    %397 = vmatpush1.msra.mxu0 0.0
    %398 = vmatprep.subr.mxu0 0.0
    %399 = vmatpush1.msra.mxu0 0.0
    %400 = vmatprep.subr.mxu0 0.0
    %401 = vmatpush1.msra.mxu0 0.0
    %402 = vmatprep.subr.mxu0 0.0
    %403 = vmatpush1.msra.mxu0 0.0
    %404 = vmatprep.subr.mxu0 0.0
    %405 = vmatpush1.msra.mxu0 0.0
    %406 = vmatprep.subr.mxu0 0.0
    %407 = vmatpush1.msra.mxu0 0.0
    %408 = vmatprep.subr.mxu0 0.0
    %409 = vmatpush1.msra.mxu0 0.0
    %410 = vmatprep.subr.mxu0 0.0
    %411 = vmatpush1.msra.mxu0 0.0
    %412 = vmatprep.mubr.f32.mxu0 0.0
    %413 = vmatmul.mubr.f32.gmra.mrb[0].mxu0 %v248
    %v414 = vpop.f32.mrb[0].mxu0
    %v415 = vadd.f32 %v230, %v414
    %v416 = vpop.f32.mrb[0].mxu0
    %v417 = vadd.f32 %v230, %v416
    %418 = vmatprep.mubr.f32.mxu0 0.0
    %419 = vmatmul.mubr.f32.gmra.mrb[0].mxu0 %v251
    %v420 = vpop.f32.mrb[0].mxu0
    %v421 = vadd.f32 %v235, %v420
    %v422 = vpop.f32.mrb[0].mxu0
    %v423 = vadd.f32 %v235, %v422
    %424 = vmatprep.mubr.f32.mxu0 0.0
    %425 = vmatmul.mubr.f32.gmra.mrb[0].mxu0 %v254
    %v426 = vpop.f32.mrb[0].mxu0
    %v427 = vadd.f32 %v240, %v426
    %v428 = vpop.f32.mrb[0].mxu0
    %v429 = vadd.f32 %v240, %v428
    %430 = vmatprep.mubr.f32.mxu0 0.0
    %431 = vmatmul.mubr.f32.gmra.mrb[0].mxu0 %v257
    %v432 = vpop.f32.mrb[0].mxu0
    %v433 = vadd.f32 %v245, %v432
    %v434 = vpop.f32.mrb[0].mxu0
    %v435 = vadd.f32 %v245, %v434
    %436 = vdwg.mxu0
    %vm437 = vcmp.ge.f32.partialorder %v326, 0.0
    %vm438 = vcmp.ge.f32.partialorder %v328, 0.0
    %vm439 = vcmp.ge.f32.partialorder %v415, 0.0
    %vm440 = vcmp.ge.f32.partialorder %v417, 0.0
    %vm441 = vcmp.ge.f32.partialorder %v332, 0.0
    %vm442 = vcmp.ge.f32.partialorder %v334, 0.0
    %vm443 = vcmp.ge.f32.partialorder %v421, 0.0
    %vm444 = vcmp.ge.f32.partialorder %v423, 0.0
    %vm445 = vcmp.ge.f32.partialorder %v338, 0.0
    %vm446 = vcmp.ge.f32.partialorder %v340, 0.0
    %vm447 = vcmp.ge.f32.partialorder %v427, 0.0
    %vm448 = vcmp.ge.f32.partialorder %v429, 0.0
    %vm449 = vcmp.ge.f32.partialorder %v344, 0.0
    %vm450 = vcmp.ge.f32.partialorder %v346, 0.0
    %vm451 = vcmp.ge.f32.partialorder %v433, 0.0
    %vm452 = vcmp.ge.f32.partialorder %v435, 0.0
    %v453 = vld [vmem:[%s6] sm:$0xff]
    %v454 = vld [vmem:[%s6 + $0x8] sm:$0xff]
    %v455 = vld [vmem:[%s6 + $0x10] sm:$0xff]
    %v456 = vld [vmem:[%s6 + $0x18] sm:$0xff]
    %458 = vset.pattern.permute.xlu0 0
    %459 = vperm.xlu0 %458, %v453
    %v460 = vpop.permute.xlu0 %459
    %463 = vset.pattern.permute.xlu0 0
    %464 = vperm.xlu0 %463, %v454
    %v465 = vpop.permute.xlu0 %464
    %468 = vset.pattern.permute.xlu0 0
    %469 = vperm.xlu0 %468, %v455
    %v470 = vpop.permute.xlu0 %469
    %473 = vset.pattern.permute.xlu0 0
    %474 = vperm.xlu0 %473, %v456
    %v475 = vpop.permute.xlu0 %474
    %v477 = vmul.f32 %v326, %v460
    %v478 = vmul.f32 %v328, %v460
    %v479 = vmul.f32 %v415, %v460
    %v480 = vmul.f32 %v417, %v460
    %v481 = vmul.f32 %v332, %v465
    %v482 = vmul.f32 %v334, %v465
    %v483 = vmul.f32 %v421, %v465
    %v484 = vmul.f32 %v423, %v465
    %v485 = vmul.f32 %v338, %v470
    %v486 = vmul.f32 %v340, %v470
    %v487 = vmul.f32 %v427, %v470
    %v488 = vmul.f32 %v429, %v470
    %v489 = vmul.f32 %v344, %v475
    %v490 = vmul.f32 %v346, %v475
    %v491 = vmul.f32 %v433, %v475
    %v492 = vmul.f32 %v435, %v475
    %v493 = vsel %vm437, %v326, %v477
    %v494 = vsel %vm438, %v328, %v478
    %v495 = vsel %vm439, %v415, %v479
    %v496 = vsel %vm440, %v417, %v480
    %v497 = vsel %vm441, %v332, %v481
    %v498 = vsel %vm442, %v334, %v482
    %v499 = vsel %vm443, %v421, %v483
    %v500 = vsel %vm444, %v423, %v484
    %v501 = vsel %vm445, %v338, %v485
    %v502 = vsel %vm446, %v340, %v486
    %v503 = vsel %vm447, %v427, %v487
    %v504 = vsel %vm448, %v429, %v488
    %v505 = vsel %vm449, %v344, %v489
    %v506 = vsel %vm450, %v346, %v490
    %v507 = vsel %vm451, %v433, %v491
    %v508 = vsel %vm452, %v435, %v492
    %509 = vst [vmem:[%s8] sm:$0xff] %v493
    %510 = vst [vmem:[%s8 + $0x8] sm:$0xff] %v494
    %511 = vst [vmem:[%s8 + $0x10] sm:$0xff] %v495
    %512 = vst [vmem:[%s8 + $0x18] sm:$0xff] %v496
    %513 = vst [vmem:[%s8 + $0x20] sm:$0xff] %v497
    %514 = vst [vmem:[%s8 + $0x28] sm:$0xff] %v498
    %515 = vst [vmem:[%s8 + $0x30] sm:$0xff] %v499
    %516 = vst [vmem:[%s8 + $0x38] sm:$0xff] %v500
    %517 = vst [vmem:[%s8 + $0x40] sm:$0xff] %v501
    %518 = vst [vmem:[%s8 + $0x48] sm:$0xff] %v502
    %519 = vst [vmem:[%s8 + $0x50] sm:$0xff] %v503
    %520 = vst [vmem:[%s8 + $0x58] sm:$0xff] %v504
    %521 = vst [vmem:[%s8 + $0x60] sm:$0xff] %v505
    %522 = vst [vmem:[%s8 + $0x68] sm:$0xff] %v506
    %523 = vst [vmem:[%s8 + $0x70] sm:$0xff] %v507
    %524 = vst [vmem:[%s8 + $0x78] sm:$0xff] %v508
    // Predicated region
    $region34: #{dense_projection_forward.3} parent=1 // pred_check
      _
    $region35: #{dense_projection_forward.3} parent=1 // pred_check_branch
      %526 = sbr.rel (0) target = $region37
    $region36: #{dense_projection_forward.3} parent=1 // pred_region
      _
    $region37: #{dense_projection_forward.3} parent=1 // pred_fallthru
      _
    // Predicated region
    $region38: #{dense_projection_forward.3} parent=1 // pred_check
      _
    $region39: #{dense_projection_forward.3} parent=1 // pred_check_branch
      %528 = sbr.rel (0) target = $region41
    $region40: #{dense_projection_forward.3} parent=1 // pred_region
      _
    $region41: #{dense_projection_forward.3} parent=1 // pred_fallthru
      _
    // Predicated region
    $region42: #{dense_projection_forward.3} parent=1 // pred_check
      _
    $region43: #{dense_projection_forward.3} parent=1 // pred_check_branch
      %530 = sbr.rel (0) target = $region45
    $region44: #{dense_projection_forward.3} parent=1 // pred_region
      _
    $region45: #{dense_projection_forward.3} parent=1 // pred_fallthru
      _
    // Predicated region
    $region46: #{dense_projection_forward.3} parent=1 // pred_check
      _
    $region47: #{dense_projection_forward.3} parent=1 // pred_check_branch
      %532 = sbr.rel (0) target = $region49
    $region48: #{dense_projection_forward.3} parent=1 // pred_region
      _
    $region49: #{dense_projection_forward.3} parent=1 // pred_fallthru
      _
    %533 = vsyncpa [#allocation3], 1

// kernel: dense_projection_forward.4
$region0: #{dense_projection_forward.4}
  #allocation0 [shape = 'u32[]', space=smem, size = 0x4, offset = 0x4, fixed_abs, tag = 'smem constant byte address 0x4 - core index']
  #allocation1 [shape = 'u32[144,128]{1,0:T(1,128)}', space=vmem, size = 0x12000, scoped, tag = 'internal scratch']
  %s0 = inlined_call_operand.vmem [shape: bf16[288,512], index: 0, kind: input, shape index: {}]
  %s1 = inlined_call_operand.vmem [shape: bf16[8,288], index: 1, kind: input, shape index: {}]
  %s2 = inlined_call_operand.vmem [shape: f32[8,1], index: 2, kind: input, shape index: {}]
  %s3 = inlined_call_operand.vmem [shape: f32[8,1], index: 3, kind: input, shape index: {}]
  %s4 = inlined_call_operand.vmem [shape: f32[8,512], index: 4, kind: input, shape index: {}]
  %s5 = inlined_call_operand.vmem [shape: f32[8,512], index: 5, kind: output, shape index: {}]
  %s6 = sld [smem:[#allocation0]]
  $region30: #{dense_projection_forward.4} parent=0
    _
  %s8 = ssub.s32 1, %s6
  %s9 = scalar_select 0, %s8, %s6
  // Predicated region
  $region2: #{dense_projection_forward.4} parent=0 // pred_check
    _
  $region3: #{dense_projection_forward.4} parent=0 // pred_check_branch
    %11 = sbr.rel (0) target = $region5
  $region4: #{dense_projection_forward.4} parent=0 // pred_region
    _
  $region5: #{dense_projection_forward.4} parent=0 // pred_fallthru
    _
  // Predicated region
  $region6: #{dense_projection_forward.4} parent=0 // pred_check
    _
  $region7: #{dense_projection_forward.4} parent=0 // pred_check_branch
    %13 = sbr.rel (0) target = $region9
  $region8: #{dense_projection_forward.4} parent=0 // pred_region
    _
  $region9: #{dense_projection_forward.4} parent=0 // pred_fallthru
    _
  // Predicated region
  $region10: #{dense_projection_forward.4} parent=0 // pred_check
    _
  $region11: #{dense_projection_forward.4} parent=0 // pred_check_branch
    %15 = sbr.rel (0) target = $region13
  $region12: #{dense_projection_forward.4} parent=0 // pred_region
    _
  $region13: #{dense_projection_forward.4} parent=0 // pred_fallthru
    _
  // Predicated region
  $region14: #{dense_projection_forward.4} parent=0 // pred_check
    _
  $region15: #{dense_projection_forward.4} parent=0 // pred_check_branch
    %17 = sbr.rel (0) target = $region17
  $region16: #{dense_projection_forward.4} parent=0 // pred_region
    _
  $region17: #{dense_projection_forward.4} parent=0 // pred_fallthru
    _
  // Predicated region
  $region18: #{dense_projection_forward.4} parent=0 // pred_check
    _
  $region19: #{dense_projection_forward.4} parent=0 // pred_check_branch
    %19 = sbr.rel (0) target = $region21
  $region20: #{dense_projection_forward.4} parent=0 // pred_region
    _
  $region21: #{dense_projection_forward.4} parent=0 // pred_fallthru
    _
  %v21 = vld [vmem:[%s1] sm:$0xff]
  %v22 = vld [vmem:[%s1 + $0x8] sm:$0xf]
  %v23 = vld [vmem:[%s0] sm:$0xff]
  %v24 = vld [vmem:[%s0 + $0x8] sm:$0xff]
  %v25 = vld [vmem:[%s0 + $0x10] sm:$0xff]
  %v26 = vld [vmem:[%s0 + $0x18] sm:$0xff]
  %v27 = vld [vmem:[%s0 + $0x20] sm:$0xff]
  %v28 = vld [vmem:[%s0 + $0x28] sm:$0xff]
  %v29 = vld [vmem:[%s0 + $0x30] sm:$0xff]
  %v30 = vld [vmem:[%s0 + $0x38] sm:$0xff]
  %v31 = vld [vmem:[%s0 + $0x40] sm:$0xff]
  %v32 = vld [vmem:[%s0 + $0x48] sm:$0xff]
  %v33 = vld [vmem:[%s0 + $0x50] sm:$0xff]
  %v34 = vld [vmem:[%s0 + $0x58] sm:$0xff]
  %v35 = vld [vmem:[%s0 + $0x60] sm:$0xff]
  %v36 = vld [vmem:[%s0 + $0x68] sm:$0xff]
  %v37 = vld [vmem:[%s0 + $0x70] sm:$0xff]
  %v38 = vld [vmem:[%s0 + $0x78] sm:$0xff]
  %v39 = vld [vmem:[%s0 + $0x80] sm:$0xff]
  %v40 = vld [vmem:[%s0 + $0x88] sm:$0xff]
  %v41 = vld [vmem:[%s0 + $0x90] sm:$0xff]
  %v42 = vld [vmem:[%s0 + $0x98] sm:$0xff]
  %v43 = vld [vmem:[%s0 + $0xa0] sm:$0xff]
  %v44 = vld [vmem:[%s0 + $0xa8] sm:$0xff]
  %v45 = vld [vmem:[%s0 + $0xb0] sm:$0xff]
  %v46 = vld [vmem:[%s0 + $0xb8] sm:$0xff]
  %v47 = vld [vmem:[%s0 + $0xc0] sm:$0xff]
  %v48 = vld [vmem:[%s0 + $0xc8] sm:$0xff]
  %v49 = vld [vmem:[%s0 + $0xd0] sm:$0xff]
  %v50 = vld [vmem:[%s0 + $0xd8] sm:$0xff]
  %v51 = vld [vmem:[%s0 + $0xe0] sm:$0xff]
  %v52 = vld [vmem:[%s0 + $0xe8] sm:$0xff]
  %v53 = vld [vmem:[%s0 + $0xf0] sm:$0xff]
  %v54 = vld [vmem:[%s0 + $0xf8] sm:$0xff]
  %v55 = vld [vmem:[%s0 + $0x100] sm:$0xff]
  %v56 = vld [vmem:[%s0 + $0x108] sm:$0xff]
  %v57 = vld [vmem:[%s0 + $0x110] sm:$0xff]
  %v58 = vld [vmem:[%s0 + $0x118] sm:$0xff]
  %v59 = vld [vmem:[%s0 + $0x120] sm:$0xff]
  %v60 = vld [vmem:[%s0 + $0x128] sm:$0xff]
  %v61 = vld [vmem:[%s0 + $0x130] sm:$0xff]
  %v62 = vld [vmem:[%s0 + $0x138] sm:$0xff]
  %v63 = vld [vmem:[%s0 + $0x140] sm:$0xff]
  %v64 = vld [vmem:[%s0 + $0x148] sm:$0xff]
  %v65 = vld [vmem:[%s0 + $0x150] sm:$0xff]
  %v66 = vld [vmem:[%s0 + $0x158] sm:$0xff]
  %v67 = vld [vmem:[%s0 + $0x160] sm:$0xff]
  %v68 = vld [vmem:[%s0 + $0x168] sm:$0xff]
  %v69 = vld [vmem:[%s0 + $0x170] sm:$0xff]
  %v70 = vld [vmem:[%s0 + $0x178] sm:$0xff]
  %v71 = vld [vmem:[%s0 + $0x180] sm:$0xff]
  %v72 = vld [vmem:[%s0 + $0x188] sm:$0xff]
  %v73 = vld [vmem:[%s0 + $0x190] sm:$0xff]
  %v74 = vld [vmem:[%s0 + $0x198] sm:$0xff]
  %v75 = vld [vmem:[%s0 + $0x1a0] sm:$0xff]
  %v76 = vld [vmem:[%s0 + $0x1a8] sm:$0xff]
  %v77 = vld [vmem:[%s0 + $0x1b0] sm:$0xff]
  %v78 = vld [vmem:[%s0 + $0x1b8] sm:$0xff]
  %v79 = vld [vmem:[%s0 + $0x1c0] sm:$0xff]
  %v80 = vld [vmem:[%s0 + $0x1c8] sm:$0xff]
  %v81 = vld [vmem:[%s0 + $0x1d0] sm:$0xff]
  %v82 = vld [vmem:[%s0 + $0x1d8] sm:$0xff]
  %v83 = vld [vmem:[%s0 + $0x1e0] sm:$0xff]
  %v84 = vld [vmem:[%s0 + $0x1e8] sm:$0xff]
  %v85 = vld [vmem:[%s0 + $0x1f0] sm:$0xff]
  %v86 = vld [vmem:[%s0 + $0x1f8] sm:$0xff]
  %v87 = vld [vmem:[%s0 + $0x200] sm:$0xff]
  %v88 = vld [vmem:[%s0 + $0x208] sm:$0xff]
  %v89 = vld [vmem:[%s0 + $0x210] sm:$0xff]
  %v90 = vld [vmem:[%s0 + $0x218] sm:$0xff]
  %v91 = vld [vmem:[%s0 + $0x220] sm:$0xff]
  %v92 = vld [vmem:[%s0 + $0x228] sm:$0xff]
  %v93 = vld [vmem:[%s0 + $0x230] sm:$0xff]
  %v94 = vld [vmem:[%s0 + $0x238] sm:$0xff]
  %v95 = vld [vmem:[%s2] sm:$0xff]
  %97 = vset.pattern.permute.xlu0 0
  %98 = vperm.xlu0 %97, %v95
  %v99 = vpop.permute.xlu0 %98
  %v103 = vunpack.c.l.b16 %v21
  %v104 = vunpack.c.h.b16 %v21
  %v105 = vunpack.c.l.b16 %v22
  %v106 = vpack.c.b16 %v103, %v103
  %v107 = vpack.c.b16 %v104, %v104
  %v108 = vpack.c.b16 %v105, %v105
  %v183 = vunpack.c.l.b16 %v23
  %v184 = vunpack.c.h.b16 %v23
  %v185 = vunpack.c.l.b16 %v24
  %v186 = vunpack.c.h.b16 %v24
  %v187 = vunpack.c.l.b16 %v25
  %v188 = vunpack.c.h.b16 %v25
  %v189 = vunpack.c.l.b16 %v26
  %v190 = vunpack.c.h.b16 %v26
  %v191 = vunpack.c.l.b16 %v27
  %v192 = vunpack.c.h.b16 %v27
  %v193 = vunpack.c.l.b16 %v28
  %v194 = vunpack.c.h.b16 %v28
  %v195 = vunpack.c.l.b16 %v29
  %v196 = vunpack.c.h.b16 %v29
  %v197 = vunpack.c.l.b16 %v30
  %v198 = vunpack.c.h.b16 %v30
  %v199 = vunpack.c.l.b16 %v31
  %v200 = vunpack.c.h.b16 %v31
  %v201 = vunpack.c.l.b16 %v32
  %v202 = vunpack.c.h.b16 %v32
  %v203 = vunpack.c.l.b16 %v33
  %v204 = vunpack.c.h.b16 %v33
  %v205 = vunpack.c.l.b16 %v34
  %v206 = vunpack.c.h.b16 %v34
  %v207 = vunpack.c.l.b16 %v35
  %v208 = vunpack.c.h.b16 %v35
  %v209 = vunpack.c.l.b16 %v36
  %v210 = vunpack.c.h.b16 %v36
  %v211 = vunpack.c.l.b16 %v37
  %v212 = vunpack.c.h.b16 %v37
  %v213 = vunpack.c.l.b16 %v38
  %v214 = vunpack.c.h.b16 %v38
  %v215 = vunpack.c.l.b16 %v39
  %v216 = vunpack.c.h.b16 %v39
  %v217 = vunpack.c.l.b16 %v40
  %v218 = vunpack.c.h.b16 %v40
  %v219 = vunpack.c.l.b16 %v41
  %v220 = vunpack.c.h.b16 %v41
  %v221 = vunpack.c.l.b16 %v42
  %v222 = vunpack.c.h.b16 %v42
  %v223 = vunpack.c.l.b16 %v43
  %v224 = vunpack.c.h.b16 %v43
  %v225 = vunpack.c.l.b16 %v44
  %v226 = vunpack.c.h.b16 %v44
  %v227 = vunpack.c.l.b16 %v45
  %v228 = vunpack.c.h.b16 %v45
  %v229 = vunpack.c.l.b16 %v46
  %v230 = vunpack.c.h.b16 %v46
  %v231 = vunpack.c.l.b16 %v47
  %v232 = vunpack.c.h.b16 %v47
  %v233 = vunpack.c.l.b16 %v48
  %v234 = vunpack.c.h.b16 %v48
  %v235 = vunpack.c.l.b16 %v49
  %v236 = vunpack.c.h.b16 %v49
  %v237 = vunpack.c.l.b16 %v50
  %v238 = vunpack.c.h.b16 %v50
  %v239 = vunpack.c.l.b16 %v51
  %v240 = vunpack.c.h.b16 %v51
  %v241 = vunpack.c.l.b16 %v52
  %v242 = vunpack.c.h.b16 %v52
  %v243 = vunpack.c.l.b16 %v53
  %v244 = vunpack.c.h.b16 %v53
  %v245 = vunpack.c.l.b16 %v54
  %v246 = vunpack.c.h.b16 %v54
  %v247 = vunpack.c.l.b16 %v55
  %v248 = vunpack.c.h.b16 %v55
  %v249 = vunpack.c.l.b16 %v56
  %v250 = vunpack.c.h.b16 %v56
  %v251 = vunpack.c.l.b16 %v57
  %v252 = vunpack.c.h.b16 %v57
  %v253 = vunpack.c.l.b16 %v58
  %v254 = vunpack.c.h.b16 %v58
  %v255 = vunpack.c.l.b16 %v59
  %v256 = vunpack.c.h.b16 %v59
  %v257 = vunpack.c.l.b16 %v60
  %v258 = vunpack.c.h.b16 %v60
  %v259 = vunpack.c.l.b16 %v61
  %v260 = vunpack.c.h.b16 %v61
  %v261 = vunpack.c.l.b16 %v62
  %v262 = vunpack.c.h.b16 %v62
  %v263 = vunpack.c.l.b16 %v63
  %v264 = vunpack.c.h.b16 %v63
  %v265 = vunpack.c.l.b16 %v64
  %v266 = vunpack.c.h.b16 %v64
  %v267 = vunpack.c.l.b16 %v65
  %v268 = vunpack.c.h.b16 %v65
  %v269 = vunpack.c.l.b16 %v66
  %v270 = vunpack.c.h.b16 %v66
  %v271 = vunpack.c.l.b16 %v67
  %v272 = vunpack.c.h.b16 %v67
  %v273 = vunpack.c.l.b16 %v68
  %v274 = vunpack.c.h.b16 %v68
  %v275 = vunpack.c.l.b16 %v69
  %v276 = vunpack.c.h.b16 %v69
  %v277 = vunpack.c.l.b16 %v70
  %v278 = vunpack.c.h.b16 %v70
  %v279 = vunpack.c.l.b16 %v71
  %v280 = vunpack.c.h.b16 %v71
  %v281 = vunpack.c.l.b16 %v72
  %v282 = vunpack.c.h.b16 %v72
  %v283 = vunpack.c.l.b16 %v73
  %v284 = vunpack.c.h.b16 %v73
  %v285 = vunpack.c.l.b16 %v74
  %v286 = vunpack.c.h.b16 %v74
  %v287 = vunpack.c.l.b16 %v75
  %v288 = vunpack.c.h.b16 %v75
  %v289 = vunpack.c.l.b16 %v76
  %v290 = vunpack.c.h.b16 %v76
  %v291 = vunpack.c.l.b16 %v77
  %v292 = vunpack.c.h.b16 %v77
  %v293 = vunpack.c.l.b16 %v78
  %v294 = vunpack.c.h.b16 %v78
  %v295 = vunpack.c.l.b16 %v79
  %v296 = vunpack.c.h.b16 %v79
  %v297 = vunpack.c.l.b16 %v80
  %v298 = vunpack.c.h.b16 %v80
  %v299 = vunpack.c.l.b16 %v81
  %v300 = vunpack.c.h.b16 %v81
  %v301 = vunpack.c.l.b16 %v82
  %v302 = vunpack.c.h.b16 %v82
  %v303 = vunpack.c.l.b16 %v83
  %v304 = vunpack.c.h.b16 %v83
  %v305 = vunpack.c.l.b16 %v84
  %v306 = vunpack.c.h.b16 %v84
  %v307 = vunpack.c.l.b16 %v85
  %v308 = vunpack.c.h.b16 %v85
  %v309 = vunpack.c.l.b16 %v86
  %v310 = vunpack.c.h.b16 %v86
  %v311 = vunpack.c.l.b16 %v87
  %v312 = vunpack.c.h.b16 %v87
  %v313 = vunpack.c.l.b16 %v88
  %v314 = vunpack.c.h.b16 %v88
  %v315 = vunpack.c.l.b16 %v89
  %v316 = vunpack.c.h.b16 %v89
  %v317 = vunpack.c.l.b16 %v90
  %v318 = vunpack.c.h.b16 %v90
  %v319 = vunpack.c.l.b16 %v91
  %v320 = vunpack.c.h.b16 %v91
  %v321 = vunpack.c.l.b16 %v92
  %v322 = vunpack.c.h.b16 %v92
  %v323 = vunpack.c.l.b16 %v93
  %v324 = vunpack.c.h.b16 %v93
  %v325 = vunpack.c.l.b16 %v94
  %v326 = vunpack.c.h.b16 %v94
  %v327 = vpack.c.b16 %v187, %v183
  %v328 = vpack.c.b16 %v188, %v184
  %v329 = vpack.c.b16 %v189, %v185
  %v330 = vpack.c.b16 %v190, %v186
  %v331 = vpack.c.b16 %v195, %v191
  %v332 = vpack.c.b16 %v196, %v192
  %v333 = vpack.c.b16 %v197, %v193
  %v334 = vpack.c.b16 %v198, %v194
  %v335 = vpack.c.b16 %v203, %v199
  %v336 = vpack.c.b16 %v204, %v200
  %v337 = vpack.c.b16 %v205, %v201
  %v338 = vpack.c.b16 %v206, %v202
  %v339 = vpack.c.b16 %v211, %v207
  %v340 = vpack.c.b16 %v212, %v208
  %v341 = vpack.c.b16 %v213, %v209
  %v342 = vpack.c.b16 %v214, %v210
  %v343 = vpack.c.b16 %v219, %v215
  %v344 = vpack.c.b16 %v220, %v216
  %v345 = vpack.c.b16 %v221, %v217
  %v346 = vpack.c.b16 %v222, %v218
  %v347 = vpack.c.b16 %v227, %v223
  %v348 = vpack.c.b16 %v228, %v224
  %v349 = vpack.c.b16 %v229, %v225
  %v350 = vpack.c.b16 %v230, %v226
  %v351 = vpack.c.b16 %v235, %v231
  %v352 = vpack.c.b16 %v236, %v232
  %v353 = vpack.c.b16 %v237, %v233
  %v354 = vpack.c.b16 %v238, %v234
  %v355 = vpack.c.b16 %v243, %v239
  %v356 = vpack.c.b16 %v244, %v240
  %v357 = vpack.c.b16 %v245, %v241
  %v358 = vpack.c.b16 %v246, %v242
  %v359 = vpack.c.b16 %v251, %v247
  %v360 = vpack.c.b16 %v252, %v248
  %v361 = vpack.c.b16 %v253, %v249
  %v362 = vpack.c.b16 %v254, %v250
  %v363 = vpack.c.b16 %v259, %v255
  %v364 = vpack.c.b16 %v260, %v256
  %v365 = vpack.c.b16 %v261, %v257
  %v366 = vpack.c.b16 %v262, %v258
  %v367 = vpack.c.b16 %v267, %v263
  %v368 = vpack.c.b16 %v268, %v264
  %v369 = vpack.c.b16 %v269, %v265
  %v370 = vpack.c.b16 %v270, %v266
  %v371 = vpack.c.b16 %v275, %v271
  %v372 = vpack.c.b16 %v276, %v272
  %v373 = vpack.c.b16 %v277, %v273
  %v374 = vpack.c.b16 %v278, %v274
  %v375 = vpack.c.b16 %v283, %v279
  %v376 = vpack.c.b16 %v284, %v280
  %v377 = vpack.c.b16 %v285, %v281
  %v378 = vpack.c.b16 %v286, %v282
  %v379 = vpack.c.b16 %v291, %v287
  %v380 = vpack.c.b16 %v292, %v288
  %v381 = vpack.c.b16 %v293, %v289
  %v382 = vpack.c.b16 %v294, %v290
  %v383 = vpack.c.b16 %v299, %v295
  %v384 = vpack.c.b16 %v300, %v296
  %v385 = vpack.c.b16 %v301, %v297
  %v386 = vpack.c.b16 %v302, %v298
  %v387 = vpack.c.b16 %v307, %v303
  %v388 = vpack.c.b16 %v308, %v304
  %v389 = vpack.c.b16 %v309, %v305
  %v390 = vpack.c.b16 %v310, %v306
  %v391 = vpack.c.b16 %v315, %v311
  %v392 = vpack.c.b16 %v316, %v312
  %v393 = vpack.c.b16 %v317, %v313
  %v394 = vpack.c.b16 %v318, %v314
  %v395 = vpack.c.b16 %v323, %v319
  %v396 = vpack.c.b16 %v324, %v320
  %v397 = vpack.c.b16 %v325, %v321
  %v398 = vpack.c.b16 %v326, %v322
  %vm471 = vcmask 261120
  %v473 = vsel %vm471, %v108, 0
  %475 = vmatprep.subr.bf16.mxu0 %v328
  %476 = vmatpush1.bf16.msra.mxu0 %v327
  %477 = vmatprep.subr.bf16.mxu0 %v332
  %478 = vmatpush1.bf16.msra.mxu0 %v331
  %479 = vmatprep.subr.bf16.mxu0 %v336
  %480 = vmatpush1.bf16.msra.mxu0 %v335
  %481 = vmatprep.subr.bf16.mxu0 %v340
  %482 = vmatpush1.bf16.msra.mxu0 %v339
  %483 = vmatprep.subr.bf16.mxu0 %v344
  %484 = vmatpush1.bf16.msra.mxu0 %v343
  %485 = vmatprep.subr.bf16.mxu0 %v348
  %486 = vmatpush1.bf16.msra.mxu0 %v347
  %487 = vmatprep.subr.bf16.mxu0 %v352
  %488 = vmatpush1.bf16.msra.mxu0 %v351
  %489 = vmatprep.subr.bf16.mxu0 %v356
  %490 = vmatpush1.bf16.msra.mxu0 %v355
  %491 = vmatprep.subr.bf16.mxu0 %v360
  %492 = vmatpush1.bf16.msra.mxu0 %v359
  %493 = vmatprep.subr.bf16.mxu0 %v364
  %494 = vmatpush1.bf16.msra.mxu0 %v363
  %495 = vmatprep.subr.bf16.mxu0 %v368
  %496 = vmatpush1.bf16.msra.mxu0 %v367
  %497 = vmatprep.subr.bf16.mxu0 %v372
  %498 = vmatpush1.bf16.msra.mxu0 %v371
  %499 = vmatprep.subr.bf16.mxu0 %v376
  %500 = vmatpush1.bf16.msra.mxu0 %v375
  %501 = vmatprep.subr.bf16.mxu0 %v380
  %502 = vmatpush1.bf16.msra.mxu0 %v379
  %503 = vmatprep.subr.bf16.mxu0 %v384
  %504 = vmatpush1.bf16.msra.mxu0 %v383
  %505 = vmatprep.subr.bf16.mxu0 %v388
  %506 = vmatpush1.bf16.msra.mxu0 %v387
  %507 = vmatprep.mubr.bf16.mxu0 %v107
  %508 = vmatmul.mubr.bf16.gmra.mrb[0].mxu0 %v106
  %v509 = vpop.f32.mrb[0].mxu0
  %v510 = vadd.f32 %v99, %v509
  %v511 = vpop.f32.mrb[0].mxu0
  %v512 = vadd.f32 %v99, %v511
  %v513 = vpop.f32.mrb[0].mxu0
  %v514 = vpop.f32.mrb[0].mxu0
  %515 = vdwg.mxu0
  %516 = vmatprep.subr.bf16.mxu0 %v392
  %517 = vmatpush1.bf16.msra.mxu0 %v391
  %518 = vmatprep.subr.bf16.mxu0 %v396
  %519 = vmatpush1.bf16.msra.mxu0 %v395
  %520 = vmatprep.subr.bf16.mxu0 0
  %521 = vmatpush1.bf16.msra.mxu0 0
  %522 = vmatprep.subr.bf16.mxu0 0
  %523 = vmatpush1.bf16.msra.mxu0 0
  %524 = vmatprep.subr.bf16.mxu0 0
  %525 = vmatpush1.bf16.msra.mxu0 0
  %526 = vmatprep.subr.bf16.mxu0 0
  %527 = vmatpush1.bf16.msra.mxu0 0
  %528 = vmatprep.subr.bf16.mxu0 0
  %529 = vmatpush1.bf16.msra.mxu0 0
  %530 = vmatprep.subr.bf16.mxu0 0
  %531 = vmatpush1.bf16.msra.mxu0 0
  %532 = vmatprep.subr.bf16.mxu0 0
  %533 = vmatpush1.bf16.msra.mxu0 0
  %534 = vmatprep.subr.bf16.mxu0 0
  %535 = vmatpush1.bf16.msra.mxu0 0
  %536 = vmatprep.subr.bf16.mxu0 0
  %537 = vmatpush1.bf16.msra.mxu0 0
  %538 = vmatprep.subr.bf16.mxu0 0
  %539 = vmatpush1.bf16.msra.mxu0 0
  %540 = vmatprep.subr.bf16.mxu0 0
  %541 = vmatpush1.bf16.msra.mxu0 0
  %542 = vmatprep.subr.bf16.mxu0 0
  %543 = vmatpush1.bf16.msra.mxu0 0
  %544 = vmatprep.subr.bf16.mxu0 0
  %545 = vmatpush1.bf16.msra.mxu0 0
  %546 = vmatprep.subr.bf16.mxu0 0
  %547 = vmatpush1.bf16.msra.mxu0 0
  %548 = vmatprep.mubr.bf16.mxu0 0
  %549 = vmatmul.mubr.bf16.gmra.mrb[0].mxu0 %v473
  %v550 = vpop.f32.mrb[0].mxu0
  %v551 = vadd.f32 %v510, %v550
  %v552 = vpop.f32.mrb[0].mxu0
  %v553 = vadd.f32 %v512, %v552
  %v554 = vpop.f32.mrb[0].mxu0
  %v555 = vpop.f32.mrb[0].mxu0
  %556 = vdwg.mxu0
  %557 = vmatprep.subr.bf16.mxu0 %v330
  %558 = vmatpush1.bf16.msra.mxu0 %v329
  %559 = vmatprep.subr.bf16.mxu0 %v334
  %560 = vmatpush1.bf16.msra.mxu0 %v333
  %561 = vmatprep.subr.bf16.mxu0 %v338
  %562 = vmatpush1.bf16.msra.mxu0 %v337
  %563 = vmatprep.subr.bf16.mxu0 %v342
  %564 = vmatpush1.bf16.msra.mxu0 %v341
  %565 = vmatprep.subr.bf16.mxu0 %v346
  %566 = vmatpush1.bf16.msra.mxu0 %v345
  %567 = vmatprep.subr.bf16.mxu0 %v350
  %568 = vmatpush1.bf16.msra.mxu0 %v349
  %569 = vmatprep.subr.bf16.mxu0 %v354
  %570 = vmatpush1.bf16.msra.mxu0 %v353
  %571 = vmatprep.subr.bf16.mxu0 %v358
  %572 = vmatpush1.bf16.msra.mxu0 %v357
  %573 = vmatprep.subr.bf16.mxu0 %v362
  %574 = vmatpush1.bf16.msra.mxu0 %v361
  %575 = vmatprep.subr.bf16.mxu0 %v366
  %576 = vmatpush1.bf16.msra.mxu0 %v365
  %577 = vmatprep.subr.bf16.mxu0 %v370
  %578 = vmatpush1.bf16.msra.mxu0 %v369
  %579 = vmatprep.subr.bf16.mxu0 %v374
  %580 = vmatpush1.bf16.msra.mxu0 %v373
  %581 = vmatprep.subr.bf16.mxu0 %v378
  %582 = vmatpush1.bf16.msra.mxu0 %v377
  %583 = vmatprep.subr.bf16.mxu0 %v382
  %584 = vmatpush1.bf16.msra.mxu0 %v381
  %585 = vmatprep.subr.bf16.mxu0 %v386
  %586 = vmatpush1.bf16.msra.mxu0 %v385
  %587 = vmatprep.subr.bf16.mxu0 %v390
  %588 = vmatpush1.bf16.msra.mxu0 %v389
  %589 = vmatprep.mubr.bf16.mxu0 %v107
  %590 = vmatmul.mubr.bf16.gmra.mrb[0].mxu0 %v106
  %v591 = vpop.f32.mrb[0].mxu0
  %v592 = vadd.f32 %v99, %v591
  %v593 = vpop.f32.mrb[0].mxu0
  %v594 = vadd.f32 %v99, %v593
  %v595 = vpop.f32.mrb[0].mxu0
  %v596 = vpop.f32.mrb[0].mxu0
  %597 = vdwg.mxu0
  %598 = vmatprep.subr.bf16.mxu0 %v394
  %599 = vmatpush1.bf16.msra.mxu0 %v393
  %600 = vmatprep.subr.bf16.mxu0 %v398
  %601 = vmatpush1.bf16.msra.mxu0 %v397
  %602 = vmatprep.subr.bf16.mxu0 0
  %603 = vmatpush1.bf16.msra.mxu0 0
  %604 = vmatprep.subr.bf16.mxu0 0
  %605 = vmatpush1.bf16.msra.mxu0 0
  %606 = vmatprep.subr.bf16.mxu0 0
  %607 = vmatpush1.bf16.msra.mxu0 0
  %608 = vmatprep.subr.bf16.mxu0 0
  %609 = vmatpush1.bf16.msra.mxu0 0
  %610 = vmatprep.subr.bf16.mxu0 0
  %611 = vmatpush1.bf16.msra.mxu0 0
  %612 = vmatprep.subr.bf16.mxu0 0
  %613 = vmatpush1.bf16.msra.mxu0 0
  %614 = vmatprep.subr.bf16.mxu0 0
  %615 = vmatpush1.bf16.msra.mxu0 0
  %616 = vmatprep.subr.bf16.mxu0 0
  %617 = vmatpush1.bf16.msra.mxu0 0
  %618 = vmatprep.subr.bf16.mxu0 0
  %619 = vmatpush1.bf16.msra.mxu0 0
  %620 = vmatprep.subr.bf16.mxu0 0
  %621 = vmatpush1.bf16.msra.mxu0 0
  %622 = vmatprep.subr.bf16.mxu0 0
  %623 = vmatpush1.bf16.msra.mxu0 0
  %624 = vmatprep.subr.bf16.mxu0 0
  %625 = vmatpush1.bf16.msra.mxu0 0
  %626 = vmatprep.subr.bf16.mxu0 0
  %627 = vmatpush1.bf16.msra.mxu0 0
  %628 = vmatprep.subr.bf16.mxu0 0
  %629 = vmatpush1.bf16.msra.mxu0 0
  %630 = vmatprep.mubr.bf16.mxu0 0
  %631 = vmatmul.mubr.bf16.gmra.mrb[0].mxu0 %v473
  %v632 = vpop.f32.mrb[0].mxu0
  %v633 = vadd.f32 %v592, %v632
  %v634 = vpop.f32.mrb[0].mxu0
  %v635 = vadd.f32 %v594, %v634
  %v636 = vpop.f32.mrb[0].mxu0
  %v637 = vpop.f32.mrb[0].mxu0
  %638 = vdwg.mxu0
  %vm639 = vcmp.ge.f32.partialorder %v551, 0.0
  %vm640 = vcmp.ge.f32.partialorder %v553, 0.0
  %vm641 = vcmp.ge.f32.partialorder %v633, 0.0
  %vm642 = vcmp.ge.f32.partialorder %v635, 0.0
  %v643 = vld [vmem:[%s3] sm:$0xff]
  %645 = vset.pattern.permute.xlu0 0
  %646 = vperm.xlu0 %645, %v643
  %v647 = vpop.permute.xlu0 %646
  %v649 = vmul.f32 %v551, %v647
  %v650 = vmul.f32 %v553, %v647
  %v651 = vmul.f32 %v633, %v647
  %v652 = vmul.f32 %v635, %v647
  %v653 = vsel %vm639, %v551, %v649
  %v654 = vsel %vm640, %v553, %v650
  %v655 = vsel %vm641, %v633, %v651
  %v656 = vsel %vm642, %v635, %v652
  %v657 = vld [vmem:[%s4] sm:$0xff]
  %v658 = vld [vmem:[%s4 + $0x8] sm:$0xff]
  %v659 = vld [vmem:[%s4 + $0x10] sm:$0xff]
  %v660 = vld [vmem:[%s4 + $0x18] sm:$0xff]
  %v661 = vsub.f32 %v653, %v657
  %v662 = vsub.f32 %v654, %v658
  %v663 = vsub.f32 %v655, %v659
  %v664 = vsub.f32 %v656, %v660
  %665 = vst [vmem:[%s5] sm:$0xff] %v661
  %666 = vst [vmem:[%s5 + $0x8] sm:$0xff] %v662
  %667 = vst [vmem:[%s5 + $0x10] sm:$0xff] %v663
  %668 = vst [vmem:[%s5 + $0x18] sm:$0xff] %v664
  // Predicated region
  $region22: #{dense_projection_forward.4} parent=0 // pred_check
    _
  $region23: #{dense_projection_forward.4} parent=0 // pred_check_branch
    %670 = sbr.rel (0) target = $region25
  $region24: #{dense_projection_forward.4} parent=0 // pred_region
    _
  $region25: #{dense_projection_forward.4} parent=0 // pred_fallthru
    _
  // Predicated region
  $region26: #{dense_projection_forward.4} parent=0 // pred_check
    _
  $region27: #{dense_projection_forward.4} parent=0 // pred_check_branch
    %672 = sbr.rel (0) target = $region29
  $region28: #{dense_projection_forward.4} parent=0 // pred_region
    _
  $region29: #{dense_projection_forward.4} parent=0 // pred_fallthru
    _

// kernel: dense_projection_forward.5
$region0: #{dense_projection_forward.5}
  #allocation0 [shape = 'u32[]', space=smem, size = 0x4, offset = 0x4, fixed_abs, tag = 'smem constant byte address 0x4 - core index']
  #allocation1 [shape = 'u32[144,128]{1,0:T(1,128)}', space=vmem, size = 0x12000, scoped, tag = 'internal scratch']
  %s0 = inlined_call_operand.vmem [shape: bf16[72,512], index: 0, kind: input, shape index: {}]
  %s1 = inlined_call_operand.vmem [shape: bf16[32,72], index: 1, kind: input, shape index: {}]
  %s2 = inlined_call_operand.vmem [shape: f32[32,1], index: 2, kind: input, shape index: {}]
  %s3 = inlined_call_operand.vmem [shape: f32[32,1], index: 3, kind: input, shape index: {}]
  %s4 = inlined_call_operand.vmem [shape: f32[32,512], index: 4, kind: input, shape index: {}]
  %s5 = inlined_call_operand.vmem [shape: f32[32,512], index: 5, kind: output, shape index: {}]
  %s6 = sld [smem:[#allocation0]]
  $region30: #{dense_projection_forward.5} parent=0
    _
  %s8 = ssub.s32 1, %s6
  %s9 = scalar_select 0, %s8, %s6
  // Predicated region
  $region2: #{dense_projection_forward.5} parent=0 // pred_check
    _
  $region3: #{dense_projection_forward.5} parent=0 // pred_check_branch
    %11 = sbr.rel (0) target = $region5
  $region4: #{dense_projection_forward.5} parent=0 // pred_region
    _
  $region5: #{dense_projection_forward.5} parent=0 // pred_fallthru
    _
  // Predicated region
  $region6: #{dense_projection_forward.5} parent=0 // pred_check
    _
  $region7: #{dense_projection_forward.5} parent=0 // pred_check_branch
    %13 = sbr.rel (0) target = $region9
  $region8: #{dense_projection_forward.5} parent=0 // pred_region
    _
  $region9: #{dense_projection_forward.5} parent=0 // pred_fallthru
    _
  // Predicated region
  $region10: #{dense_projection_forward.5} parent=0 // pred_check
    _
  $region11: #{dense_projection_forward.5} parent=0 // pred_check_branch
    %15 = sbr.rel (0) target = $region13
  $region12: #{dense_projection_forward.5} parent=0 // pred_region
    _
  $region13: #{dense_projection_forward.5} parent=0 // pred_fallthru
    _
  // Predicated region
  $region14: #{dense_projection_forward.5} parent=0 // pred_check
    _
  $region15: #{dense_projection_forward.5} parent=0 // pred_check_branch
    %17 = sbr.rel (0) target = $region17
  $region16: #{dense_projection_forward.5} parent=0 // pred_region
    _
  $region17: #{dense_projection_forward.5} parent=0 // pred_fallthru
    _
  // Predicated region
  $region18: #{dense_projection_forward.5} parent=0 // pred_check
    _
  $region19: #{dense_projection_forward.5} parent=0 // pred_check_branch
    %19 = sbr.rel (0) target = $region21
  $region20: #{dense_projection_forward.5} parent=0 // pred_region
    _
  $region21: #{dense_projection_forward.5} parent=0 // pred_fallthru
    _
  %v21 = vld [vmem:[%s1] sm:$0xf]
  %v22 = vld [vmem:[%s1 + $0x4] sm:$0xf]
  %v23 = vld [vmem:[%s1 + $0x8] sm:$0xf]
  %v24 = vld [vmem:[%s1 + $0xc] sm:$0xf]
  %v25 = vld [vmem:[%s0] sm:$0xff]
  %v26 = vld [vmem:[%s0 + $0x8] sm:$0xff]
  %v27 = vld [vmem:[%s0 + $0x10] sm:$0xff]
  %v28 = vld [vmem:[%s0 + $0x18] sm:$0xff]
  %v29 = vld [vmem:[%s0 + $0x20] sm:$0xff]
  %v30 = vld [vmem:[%s0 + $0x28] sm:$0xff]
  %v31 = vld [vmem:[%s0 + $0x30] sm:$0xff]
  %v32 = vld [vmem:[%s0 + $0x38] sm:$0xff]
  %v33 = vld [vmem:[%s0 + $0x40] sm:$0xff]
  %v34 = vld [vmem:[%s0 + $0x48] sm:$0xff]
  %v35 = vld [vmem:[%s0 + $0x50] sm:$0xff]
  %v36 = vld [vmem:[%s0 + $0x58] sm:$0xff]
  %v37 = vld [vmem:[%s0 + $0x60] sm:$0xff]
  %v38 = vld [vmem:[%s0 + $0x68] sm:$0xff]
  %v39 = vld [vmem:[%s0 + $0x70] sm:$0xff]
  %v40 = vld [vmem:[%s0 + $0x78] sm:$0xff]
  %v41 = vld [vmem:[%s0 + $0x80] sm:$0xff]
  %v42 = vld [vmem:[%s0 + $0x88] sm:$0xff]
  %v43 = vld [vmem:[%s2] sm:$0xff]
  %v44 = vld [vmem:[%s2 + $0x8] sm:$0xff]
  %v45 = vld [vmem:[%s2 + $0x10] sm:$0xff]
  %v46 = vld [vmem:[%s2 + $0x18] sm:$0xff]
  %48 = vset.pattern.permute.xlu0 0
  %49 = vperm.xlu0 %48, %v43
  %v50 = vpop.permute.xlu0 %49
  %53 = vset.pattern.permute.xlu0 0
  %54 = vperm.xlu0 %53, %v44
  %v55 = vpop.permute.xlu0 %54
  %58 = vset.pattern.permute.xlu0 0
  %59 = vperm.xlu0 %58, %v45
  %v60 = vpop.permute.xlu0 %59
  %63 = vset.pattern.permute.xlu0 0
  %64 = vperm.xlu0 %63, %v46
  %v65 = vpop.permute.xlu0 %64
  %v71 = vunpack.c.l.b16 %v21
  %v72 = vunpack.c.l.b16 %v22
  %v73 = vunpack.c.l.b16 %v23
  %v74 = vunpack.c.l.b16 %v24
  %v75 = vpack.c.b16 %v72, %v71
  %v76 = vpack.c.b16 %v74, %v73
  %v95 = vunpack.c.l.b16 %v25
  %v96 = vunpack.c.h.b16 %v25
  %v97 = vunpack.c.l.b16 %v26
  %v98 = vunpack.c.h.b16 %v26
  %v99 = vunpack.c.l.b16 %v27
  %v100 = vunpack.c.h.b16 %v27
  %v101 = vunpack.c.l.b16 %v28
  %v102 = vunpack.c.h.b16 %v28
  %v103 = vunpack.c.l.b16 %v29
  %v104 = vunpack.c.h.b16 %v29
  %v105 = vunpack.c.l.b16 %v30
  %v106 = vunpack.c.h.b16 %v30
  %v107 = vunpack.c.l.b16 %v31
  %v108 = vunpack.c.h.b16 %v31
  %v109 = vunpack.c.l.b16 %v32
  %v110 = vunpack.c.h.b16 %v32
  %v111 = vunpack.c.l.b16 %v33
  %v112 = vunpack.c.h.b16 %v33
  %v113 = vunpack.c.l.b16 %v34
  %v114 = vunpack.c.h.b16 %v34
  %v115 = vunpack.c.l.b16 %v35
  %v116 = vunpack.c.h.b16 %v35
  %v117 = vunpack.c.l.b16 %v36
  %v118 = vunpack.c.h.b16 %v36
  %v119 = vunpack.c.l.b16 %v37
  %v120 = vunpack.c.h.b16 %v37
  %v121 = vunpack.c.l.b16 %v38
  %v122 = vunpack.c.h.b16 %v38
  %v123 = vunpack.c.l.b16 %v39
  %v124 = vunpack.c.h.b16 %v39
  %v125 = vunpack.c.l.b16 %v40
  %v126 = vunpack.c.h.b16 %v40
  %v127 = vunpack.c.l.b16 %v41
  %v128 = vunpack.c.h.b16 %v41
  %v129 = vunpack.c.l.b16 %v42
  %v130 = vunpack.c.h.b16 %v42
  %v131 = vpack.c.b16 %v99, %v95
  %v132 = vpack.c.b16 %v100, %v96
  %v133 = vpack.c.b16 %v101, %v97
  %v134 = vpack.c.b16 %v102, %v98
  %v135 = vpack.c.b16 %v107, %v103
  %v136 = vpack.c.b16 %v108, %v104
  %v137 = vpack.c.b16 %v109, %v105
  %v138 = vpack.c.b16 %v110, %v106
  %v139 = vpack.c.b16 %v115, %v111
  %v140 = vpack.c.b16 %v116, %v112
  %v141 = vpack.c.b16 %v117, %v113
  %v142 = vpack.c.b16 %v118, %v114
  %v143 = vpack.c.b16 %v123, %v119
  %v144 = vpack.c.b16 %v124, %v120
  %v145 = vpack.c.b16 %v125, %v121
  %v146 = vpack.c.b16 %v126, %v122
  %v147 = vpack.c.b16 %v127, %v127
  %v148 = vpack.c.b16 %v128, %v128
  %v149 = vpack.c.b16 %v129, %v129
  %v150 = vpack.c.b16 %v130, %v130
  %vm167 = vcmask 588800
  %v169 = vsel %vm167, %v75, 0
  %v172 = vsel %vm167, %v76, 0
  %vm174 = vcmask 1043456
  %v176 = vsel %vm174, %v147, 0
  %v179 = vsel %vm174, %v148, 0
  %v182 = vsel %vm174, %v149, 0
  %v185 = vsel %vm174, %v150, 0
  %187 = vmatprep.subr.bf16.mxu0 %v132
  %188 = vmatpush1.bf16.msra.mxu0 %v131
  %189 = vmatprep.subr.bf16.mxu0 %v136
  %190 = vmatpush1.bf16.msra.mxu0 %v135
  %191 = vmatprep.subr.bf16.mxu0 %v140
  %192 = vmatpush1.bf16.msra.mxu0 %v139
  %193 = vmatprep.subr.bf16.mxu0 %v144
  %194 = vmatpush1.bf16.msra.mxu0 %v143
  %195 = vmatprep.subr.bf16.mxu0 %v179
  %196 = vmatpush1.bf16.msra.mxu0 %v176
  %197 = vmatprep.subr.bf16.mxu0 0
  %198 = vmatpush1.bf16.msra.mxu0 0
  %199 = vmatprep.subr.bf16.mxu0 0
  %200 = vmatpush1.bf16.msra.mxu0 0
  %201 = vmatprep.subr.bf16.mxu0 0
  %202 = vmatpush1.bf16.msra.mxu0 0
  %203 = vmatprep.subr.bf16.mxu0 0
  %204 = vmatpush1.bf16.msra.mxu0 0
  %205 = vmatprep.subr.bf16.mxu0 0
  %206 = vmatpush1.bf16.msra.mxu0 0
  %207 = vmatprep.subr.bf16.mxu0 0
  %208 = vmatpush1.bf16.msra.mxu0 0
  %209 = vmatprep.subr.bf16.mxu0 0
  %210 = vmatpush1.bf16.msra.mxu0 0
  %211 = vmatprep.subr.bf16.mxu0 0
  %212 = vmatpush1.bf16.msra.mxu0 0
  %213 = vmatprep.subr.bf16.mxu0 0
  %214 = vmatpush1.bf16.msra.mxu0 0
  %215 = vmatprep.subr.bf16.mxu0 0
  %216 = vmatpush1.bf16.msra.mxu0 0
  %217 = vmatprep.subr.bf16.mxu0 0
  %218 = vmatpush1.bf16.msra.mxu0 0
  %219 = vmatprep.mubr.bf16.mxu0 0
  %220 = vmatmul.mubr.bf16.gmra.mrb[0].mxu0 %v169
  %v221 = vpop.f32.mrb[0].mxu0
  %v222 = vadd.f32 %v50, %v221
  %v223 = vpop.f32.mrb[0].mxu0
  %v224 = vadd.f32 %v50, %v223
  %v225 = vpop.f32.mrb[0].mxu0
  %v226 = vadd.f32 %v55, %v225
  %v227 = vpop.f32.mrb[0].mxu0
  %v228 = vadd.f32 %v55, %v227
  %229 = vmatprep.mubr.bf16.mxu0 0
  %230 = vmatmul.mubr.bf16.gmra.mrb[0].mxu0 %v172
  %v231 = vpop.f32.mrb[0].mxu0
  %v232 = vadd.f32 %v60, %v231
  %v233 = vpop.f32.mrb[0].mxu0
  %v234 = vadd.f32 %v60, %v233
  %v235 = vpop.f32.mrb[0].mxu0
  %v236 = vadd.f32 %v65, %v235
  %v237 = vpop.f32.mrb[0].mxu0
  %v238 = vadd.f32 %v65, %v237
  %239 = vdwg.mxu0
  %240 = vmatprep.subr.bf16.mxu0 %v134
  %241 = vmatpush1.bf16.msra.mxu0 %v133
  %242 = vmatprep.subr.bf16.mxu0 %v138
  %243 = vmatpush1.bf16.msra.mxu0 %v137
  %244 = vmatprep.subr.bf16.mxu0 %v142
  %245 = vmatpush1.bf16.msra.mxu0 %v141
  %246 = vmatprep.subr.bf16.mxu0 %v146
  %247 = vmatpush1.bf16.msra.mxu0 %v145
  %248 = vmatprep.subr.bf16.mxu0 %v185
  %249 = vmatpush1.bf16.msra.mxu0 %v182
  %250 = vmatprep.subr.bf16.mxu0 0
  %251 = vmatpush1.bf16.msra.mxu0 0
  %252 = vmatprep.subr.bf16.mxu0 0
  %253 = vmatpush1.bf16.msra.mxu0 0
  %254 = vmatprep.subr.bf16.mxu0 0
  %255 = vmatpush1.bf16.msra.mxu0 0
  %256 = vmatprep.subr.bf16.mxu0 0
  %257 = vmatpush1.bf16.msra.mxu0 0
  %258 = vmatprep.subr.bf16.mxu0 0
  %259 = vmatpush1.bf16.msra.mxu0 0
  %260 = vmatprep.subr.bf16.mxu0 0
  %261 = vmatpush1.bf16.msra.mxu0 0
  %262 = vmatprep.subr.bf16.mxu0 0
  %263 = vmatpush1.bf16.msra.mxu0 0
  %264 = vmatprep.subr.bf16.mxu0 0
  %265 = vmatpush1.bf16.msra.mxu0 0
  %266 = vmatprep.subr.bf16.mxu0 0
  %267 = vmatpush1.bf16.msra.mxu0 0
  %268 = vmatprep.subr.bf16.mxu0 0
  %269 = vmatpush1.bf16.msra.mxu0 0
  %270 = vmatprep.subr.bf16.mxu0 0
  %271 = vmatpush1.bf16.msra.mxu0 0
  %272 = vmatprep.mubr.bf16.mxu0 0
  %273 = vmatmul.mubr.bf16.gmra.mrb[0].mxu0 %v169
  %v274 = vpop.f32.mrb[0].mxu0
  %v275 = vadd.f32 %v50, %v274
  %v276 = vpop.f32.mrb[0].mxu0
  %v277 = vadd.f32 %v50, %v276
  %v278 = vpop.f32.mrb[0].mxu0
  %v279 = vadd.f32 %v55, %v278
  %v280 = vpop.f32.mrb[0].mxu0
  %v281 = vadd.f32 %v55, %v280
  %282 = vmatprep.mubr.bf16.mxu0 0
  %283 = vmatmul.mubr.bf16.gmra.mrb[0].mxu0 %v172
  %v284 = vpop.f32.mrb[0].mxu0
  %v285 = vadd.f32 %v60, %v284
  %v286 = vpop.f32.mrb[0].mxu0
  %v287 = vadd.f32 %v60, %v286
  %v288 = vpop.f32.mrb[0].mxu0
  %v289 = vadd.f32 %v65, %v288
  %v290 = vpop.f32.mrb[0].mxu0
  %v291 = vadd.f32 %v65, %v290
  %292 = vdwg.mxu0
  %vm293 = vcmp.ge.f32.partialorder %v222, 0.0
  %vm294 = vcmp.ge.f32.partialorder %v224, 0.0
  %vm295 = vcmp.ge.f32.partialorder %v275, 0.0
  %vm296 = vcmp.ge.f32.partialorder %v277, 0.0
  %vm297 = vcmp.ge.f32.partialorder %v226, 0.0
  %vm298 = vcmp.ge.f32.partialorder %v228, 0.0
  %vm299 = vcmp.ge.f32.partialorder %v279, 0.0
  %vm300 = vcmp.ge.f32.partialorder %v281, 0.0
  %vm301 = vcmp.ge.f32.partialorder %v232, 0.0
  %vm302 = vcmp.ge.f32.partialorder %v234, 0.0
  %vm303 = vcmp.ge.f32.partialorder %v285, 0.0
  %vm304 = vcmp.ge.f32.partialorder %v287, 0.0
  %vm305 = vcmp.ge.f32.partialorder %v236, 0.0
  %vm306 = vcmp.ge.f32.partialorder %v238, 0.0
  %vm307 = vcmp.ge.f32.partialorder %v289, 0.0
  %vm308 = vcmp.ge.f32.partialorder %v291, 0.0
  %v309 = vld [vmem:[%s3] sm:$0xff]
  %v310 = vld [vmem:[%s3 + $0x8] sm:$0xff]
  %v311 = vld [vmem:[%s3 + $0x10] sm:$0xff]
  %v312 = vld [vmem:[%s3 + $0x18] sm:$0xff]
  %314 = vset.pattern.permute.xlu0 0
  %315 = vperm.xlu0 %314, %v309
  %v316 = vpop.permute.xlu0 %315
  %319 = vset.pattern.permute.xlu0 0
  %320 = vperm.xlu0 %319, %v310
  %v321 = vpop.permute.xlu0 %320
  %324 = vset.pattern.permute.xlu0 0
  %325 = vperm.xlu0 %324, %v311
  %v326 = vpop.permute.xlu0 %325
  %329 = vset.pattern.permute.xlu0 0
  %330 = vperm.xlu0 %329, %v312
  %v331 = vpop.permute.xlu0 %330
  %v333 = vmul.f32 %v222, %v316
  %v334 = vmul.f32 %v224, %v316
  %v335 = vmul.f32 %v275, %v316
  %v336 = vmul.f32 %v277, %v316
  %v337 = vmul.f32 %v226, %v321
  %v338 = vmul.f32 %v228, %v321
  %v339 = vmul.f32 %v279, %v321
  %v340 = vmul.f32 %v281, %v321
  %v341 = vmul.f32 %v232, %v326
  %v342 = vmul.f32 %v234, %v326
  %v343 = vmul.f32 %v285, %v326
  %v344 = vmul.f32 %v287, %v326
  %v345 = vmul.f32 %v236, %v331
  %v346 = vmul.f32 %v238, %v331
  %v347 = vmul.f32 %v289, %v331
  %v348 = vmul.f32 %v291, %v331
  %v349 = vsel %vm293, %v222, %v333
  %v350 = vsel %vm294, %v224, %v334
  %v351 = vsel %vm295, %v275, %v335
  %v352 = vsel %vm296, %v277, %v336
  %v353 = vsel %vm297, %v226, %v337
  %v354 = vsel %vm298, %v228, %v338
  %v355 = vsel %vm299, %v279, %v339
  %v356 = vsel %vm300, %v281, %v340
  %v357 = vsel %vm301, %v232, %v341
  %v358 = vsel %vm302, %v234, %v342
  %v359 = vsel %vm303, %v285, %v343
  %v360 = vsel %vm304, %v287, %v344
  %v361 = vsel %vm305, %v236, %v345
  %v362 = vsel %vm306, %v238, %v346
  %v363 = vsel %vm307, %v289, %v347
  %v364 = vsel %vm308, %v291, %v348
  %v365 = vld [vmem:[%s4] sm:$0xff]
  %v366 = vld [vmem:[%s4 + $0x8] sm:$0xff]
  %v367 = vld [vmem:[%s4 + $0x10] sm:$0xff]
  %v368 = vld [vmem:[%s4 + $0x18] sm:$0xff]
  %v369 = vld [vmem:[%s4 + $0x20] sm:$0xff]
  %v370 = vld [vmem:[%s4 + $0x28] sm:$0xff]
  %v371 = vld [vmem:[%s4 + $0x30] sm:$0xff]
  %v372 = vld [vmem:[%s4 + $0x38] sm:$0xff]
  %v373 = vld [vmem:[%s4 + $0x40] sm:$0xff]
  %v374 = vld [vmem:[%s4 + $0x48] sm:$0xff]
  %v375 = vld [vmem:[%s4 + $0x50] sm:$0xff]
  %v376 = vld [vmem:[%s4 + $0x58] sm:$0xff]
  %v377 = vld [vmem:[%s4 + $0x60] sm:$0xff]
  %v378 = vld [vmem:[%s4 + $0x68] sm:$0xff]
  %v379 = vld [vmem:[%s4 + $0x70] sm:$0xff]
  %v380 = vld [vmem:[%s4 + $0x78] sm:$0xff]
  %v381 = vadd.f32 %v349, %v365
  %v382 = vadd.f32 %v350, %v366
  %v383 = vadd.f32 %v351, %v367
  %v384 = vadd.f32 %v352, %v368
  %v385 = vadd.f32 %v353, %v369
  %v386 = vadd.f32 %v354, %v370
  %v387 = vadd.f32 %v355, %v371
  %v388 = vadd.f32 %v356, %v372
  %v389 = vadd.f32 %v357, %v373
  %v390 = vadd.f32 %v358, %v374
  %v391 = vadd.f32 %v359, %v375
  %v392 = vadd.f32 %v360, %v376
  %v393 = vadd.f32 %v361, %v377
  %v394 = vadd.f32 %v362, %v378
  %v395 = vadd.f32 %v363, %v379
  %v396 = vadd.f32 %v364, %v380
  %397 = vst [vmem:[%s5] sm:$0xff] %v381
  %398 = vst [vmem:[%s5 + $0x8] sm:$0xff] %v382
  %399 = vst [vmem:[%s5 + $0x10] sm:$0xff] %v383
  %400 = vst [vmem:[%s5 + $0x18] sm:$0xff] %v384
  %401 = vst [vmem:[%s5 + $0x20] sm:$0xff] %v385
  %402 = vst [vmem:[%s5 + $0x28] sm:$0xff] %v386
  %403 = vst [vmem:[%s5 + $0x30] sm:$0xff] %v387
  %404 = vst [vmem:[%s5 + $0x38] sm:$0xff] %v388
  %405 = vst [vmem:[%s5 + $0x40] sm:$0xff] %v389
  %406 = vst [vmem:[%s5 + $0x48] sm:$0xff] %v390
  %407 = vst [vmem:[%s5 + $0x50] sm:$0xff] %v391
  %408 = vst [vmem:[%s5 + $0x58] sm:$0xff] %v392
  %409 = vst [vmem:[%s5 + $0x60] sm:$0xff] %v393
  %410 = vst [vmem:[%s5 + $0x68] sm:$0xff] %v394
  %411 = vst [vmem:[%s5 + $0x70] sm:$0xff] %v395
  %412 = vst [vmem:[%s5 + $0x78] sm:$0xff] %v396
  // Predicated region
  $region22: #{dense_projection_forward.5} parent=0 // pred_check
    _
  $region23: #{dense_projection_forward.5} parent=0 // pred_check_branch
    %414 = sbr.rel (0) target = $region25
  $region24: #{dense_projection_forward.5} parent=0 // pred_region
    _
  $region25: #{dense_projection_forward.5} parent=0 // pred_fallthru
    _
  // Predicated region
  $region26: #{dense_projection_forward.5} parent=0 // pred_check
    _
  $region27: #{dense_projection_forward.5} parent=0 // pred_check_branch
    %416 = sbr.rel (0) target = $region29
  $region28: #{dense_projection_forward.5} parent=0 // pred_region
    _
  $region29: #{dense_projection_forward.5} parent=0 // pred_fallthru
    _

</llo_original>
